<compile_context>
chip_gen: v7x
topology: tpu7x:2x2x1
jax: 0.10.0
libtpu: 0.0.40
codegen_flags: <defaults>
</compile_context>

<pallas_src>
import functools

import jax
import jax.numpy as jnp
from jax import lax
from jax.experimental import pallas as pl
from jax.experimental.pallas import tpu as pltpu


# ---------------------------------------------------------------------------
# Kernel
# ---------------------------------------------------------------------------
def dnn_kernel(x_ref,
               w1_ref, b1_ref,
               w2_ref, b2_ref,
               w3_ref, b3_ref,
               w4_ref, b4_ref,
               o_ref):
    """One batch tile of the fused MLP.

    x_ref  : (TILE_B, D)   f32  (cast to bf16 in-kernel for the MXU)
    w*_ref : (in, out)     bf16 (BatchNorm already folded in)
    b*_ref : (1, out)      f32
    w4_ref : (H3, 1)       bf16 (head weight, column)
    b4_ref : (1, 1)        f32
    o_ref  : (TILE_B, 1)   f32
    """
    # In-kernel cast: VPU op that co-issues under MXU slack; avoids a separate
    # host-side HBM pass over x.
    x = x_ref[...].astype(jnp.bfloat16)

    # Hidden blocks: Linear -> ReLU. Folded BatchNorm lives inside the *next*
    # layer's weights/bias; Dropout is identity in eval mode.
    h = jnp.dot(x, w1_ref[...], preferred_element_type=jnp.float32) + b1_ref[...]
    h = jnp.maximum(h, 0.0)

    h = jnp.dot(h.astype(jnp.bfloat16), w2_ref[...],
                preferred_element_type=jnp.float32) + b2_ref[...]
    h = jnp.maximum(h, 0.0)

    h = jnp.dot(h.astype(jnp.bfloat16), w3_ref[...],
                preferred_element_type=jnp.float32) + b3_ref[...]
    h = jnp.maximum(h, 0.0)                                  # (TILE_B, H3) f32

    # Head: plain orientation (TILE_B, H3) . (H3, 1) -> (TILE_B, 1).
    z = jnp.dot(h.astype(jnp.bfloat16), w4_ref[...],
                preferred_element_type=jnp.float32) + b4_ref[...]

    # Sigmoid; the reciprocal goes to the EUP slot (essentially free).
    o_ref[...] = pl.reciprocal(1.0 + jnp.exp(-z), approx=True)


# ---------------------------------------------------------------------------
# Wrapper
# ---------------------------------------------------------------------------
def _round_up(v, m):
    return ((v + m - 1) // m) * m


@functools.partial(jax.jit, static_argnames=("tile_b",))
def ddos_mlp_forward(x, params, *, tile_b=None):
    """x: (B, D) float32. Returns (B, 1) float32 sigmoid probabilities."""
    w1, b1, w2, b2, w3, b3, w4, b4 = params
    B, D = x.shape
    H1, H2, H3 = w1.shape[1], w2.shape[1], w3.shape[1]

    # Batch tile: big enough to amortize per-grid-step overhead, multiple of
    # 128 (lane alignment / bf16 sublane packing), never larger than the
    # padded batch.  For large B this yields >= 2 tiles so v7x's two
    # TensorCores both get work via the "parallel" grid axis.
    if tile_b is None:
        tile_b = 2048
    tile_b = max(128, min(_round_up(tile_b, 128), _round_up(B, 128)))

    num_tiles = pl.cdiv(B, tile_b)
    padded_b = num_tiles * tile_b
    x = x.astype(jnp.float32)
    if padded_b != B:
        x = jnp.pad(x, ((0, padded_b - B), (0, 0)))

    # Generation-aware VMEM budget: derived from the chosen tile, capped so it
    # is safe on v7x (64 MiB physical) yet not an artificial ceiling elsewhere.
    f32b, bf16b = 4, 2
    vmem_est = (2 * tile_b * D * f32b                       # x tile, double-buffered
                + 2 * tile_b * 1 * f32b                     # output tile
                + tile_b * (H1 + H2 + H3) * (f32b + bf16b)  # f32 acts + bf16 casts
                + 2 * (D * H1 + H1 * H2 + H2 * H3 + H3) * bf16b
                + 2 * (H1 + H2 + H3 + 1) * f32b)
    vmem_limit = int(max(32 * 1024 * 1024, min(48 * 1024 * 1024, 2 * vmem_est)))

    weight_bytes = sum(int(p.size) * p.dtype.itemsize for p in params)
    cost = pl.CostEstimate(
        flops=2 * padded_b * (D * H1 + H1 * H2 + H2 * H3 + H3 * 1),
        transcendentals=padded_b,
        bytes_accessed=padded_b * D * 4 + padded_b * 4 + weight_bytes,
    )

    const2 = lambda i: (0, 0)
    out = pl.pallas_call(
        dnn_kernel,
        out_shape=jax.ShapeDtypeStruct((padded_b, 1), jnp.float32),
        grid=(num_tiles,),
        in_specs=[
            pl.BlockSpec((tile_b, D), lambda i: (i, 0)),   # x streamed per tile
            pl.BlockSpec((D, H1), const2),                 # weights/biases stay
            pl.BlockSpec((1, H1), const2),                 # VMEM-resident
            pl.BlockSpec((H1, H2), const2),
            pl.BlockSpec((1, H2), const2),
            pl.BlockSpec((H2, H3), const2),
            pl.BlockSpec((1, H3), const2),
            pl.BlockSpec((H3, 1), const2),
            pl.BlockSpec((1, 1), const2),
        ],
        out_specs=pl.BlockSpec((tile_b, 1), lambda i: (i, 0)),
        compiler_params=pltpu.CompilerParams(
            dimension_semantics=("parallel",),    # v7x: batch tiles across 2 TCs
            vmem_limit_bytes=vmem_limit,
        ),
        cost_estimate=cost,
    )(x, w1, b1, w2, b2, w3, b3, w4, b4)

    return out[:B]


# ---------------------------------------------------------------------------
# Host-side parameter preparation (BN folding, layout, bf16 cast)
# ---------------------------------------------------------------------------
def _fold_bn(gamma, beta, mean, var, eps=1e-5):
    scale = gamma / jnp.sqrt(var + eps)
    shift = beta - mean * scale
    return scale, shift


def prepare_params(raw, eps=1e-5):
    """Fold eval-mode BatchNorm1d into the following Linear layer, switch
    weights to (in, out) layout, cast matmul operands to bf16."""
    (W1, B1, g1, be1, m1, v1,
     W2, B2, g2, be2, m2, v2,
     W3, B3, g3, be3, m3, v3,
     W4, B4) = raw

    s1, t1 = _fold_bn(g1, be1, m1, v1, eps)
    s2, t2 = _fold_bn(g2, be2, m2, v2, eps)
    s3, t3 = _fold_bn(g3, be3, m3, v3, eps)

    bf, f32 = jnp.bfloat16, jnp.float32

    w1 = W1.T                                # (D, H1)
    b1 = B1.reshape(1, -1)
    w2 = s1[:, None] * W2.T                  # (H1, H2)
    b2 = (B2 + t1 @ W2.T).reshape(1, -1)
    w3 = s2[:, None] * W3.T                  # (H2, H3)
    b3 = (B3 + t2 @ W3.T).reshape(1, -1)
    w4 = s3[:, None] * W4.T                  # (H3, 1) head column
    b4 = (B4 + t3 @ W4.T).reshape(1, 1)

    return (w1.astype(bf), b1.astype(f32),
            w2.astype(bf), b2.astype(f32),
            w3.astype(bf), b3.astype(f32),
            w4.astype(bf), b4.astype(f32))


def init_raw_params(key, input_dim, hidden_dims=(128, 64, 32), output_dim=1):
    """Deterministic synthetic parameters in PyTorch layout:
    Linear weight (out, in) / bias (out,); BatchNorm gamma/beta/running stats."""
    dims = [input_dim] + list(hidden_dims) + [output_dim]
    keys = jax.random.split(key, 6 * len(dims))
    raw, ki = [], 0
    for li in range(len(dims) - 1):
        fan_in, fan_out = dims[li], dims[li + 1]
        bound = 1.0 / float(fan_in) ** 0.5
        W = jax.random.uniform(keys[ki], (fan_out, fan_in), jnp.float32,
                               -bound, bound); ki += 1
        B = jax.random.uniform(keys[ki], (fan_out,), jnp.float32,
                               -bound, bound); ki += 1
        raw += [W, B]
        if li < len(dims) - 2:   # hidden layers carry a BatchNorm1d
            gamma = 1.0 + 0.1 * jax.random.normal(keys[ki], (fan_out,), jnp.float32); ki += 1
            beta = 0.1 * jax.random.normal(keys[ki], (fan_out,), jnp.float32); ki += 1
            rmean = 0.1 * jax.random.normal(keys[ki], (fan_out,), jnp.float32); ki += 1
            rvar = 0.5 + jax.random.uniform(keys[ki], (fan_out,), jnp.float32); ki += 1
            raw += [gamma, beta, rmean, rvar]
    return tuple(raw)


# ---------------------------------------------------------------------------
# References
# ---------------------------------------------------------------------------
def reference_module_fp32(x, raw, eps=1e-5):
    """Pure-JAX fp32 implementation of the PyTorch module (eval mode)."""
    (W1, B1, g1, be1, m1, v1,
     W2, B2, g2, be2, m2, v2,
     W3, B3, g3, be3, m3, v3,
     W4, B4) = raw
    hi = lax.Precision.HIGHEST

    def block(h, W, B, g, be, m, v):
        h = jnp.maximum(jnp.dot(h, W.T, precision=hi) + B, 0.0)
        return (h - m) / jnp.sqrt(v + eps) * g + be      # Dropout = identity

    h = block(x, W1, B1, g1, be1, m1, v1)
    h = block(h, W2, B2, g2, be2, m2, v2)
    h = block(h, W3, B3, g3, be3, m3, v3)
    return jax.nn.sigmoid(jnp.dot(h, W4.T, precision=hi) + B4)


def reference_prepared(x, params):
    """Same math as the kernel (bf16 operands, fp32 accumulate), in plain JAX."""
    w1, b1, w2, b2, w3, b3, w4, b4 = params
    h = x.astype(jnp.bfloat16)
    h = jnp.maximum(jnp.dot(h, w1, preferred_element_type=jnp.float32) + b1, 0.0)
    h = jnp.maximum(jnp.dot(h.astype(jnp.bfloat16), w2,
                            preferred_element_type=jnp.float32) + b2, 0.0)
    h = jnp.maximum(jnp.dot(h.astype(jnp.bfloat16), w3,
                            preferred_element_type=jnp.float32) + b3, 0.0)
    z = jnp.dot(h.astype(jnp.bfloat16), w4,
                preferred_element_type=jnp.float32) + b4
    return jax.nn.sigmoid(z)


# ---------------------------------------------------------------------------
if __name__ == "__main__":
    key = jax.random.PRNGKey(0)
    kx, kp = jax.random.split(key)

    batch = 300          # not a tile multiple -> exercises padding
    input_dim = 32
    x = jax.random.normal(kx, (batch, input_dim), jnp.float32)

    raw = init_raw_params(kp, input_dim, hidden_dims=(128, 64, 32), output_dim=1)
    params = prepare_params(raw)

    ref_bf16 = reference_prepared(x, params)
    ref_fp32 = reference_module_fp32(x, raw)

    # Auto tile (single padded tile) and explicit small tile (grid of 2).
    for tb in (None, 256):
        out = jax.block_until_ready(ddos_mlp_forward(x, params, tile_b=tb))
        assert out.shape == (batch, 1), out.shape

        # Tight check vs. plain-JAX run of the exact kernel math (bf16 operands).
        err1 = float(jnp.max(jnp.abs(out - ref_bf16)))
        assert err1 < 1e-2, f"tile_b={tb}: kernel vs bf16 reference max abs err {err1}"

        # Looser check vs. fp32 eval-mode module semantics (diff = bf16 rounding).
        err2 = float(jnp.max(jnp.abs(out - ref_fp32)))
        assert err2 < 4e-2, f"tile_b={tb}: kernel vs fp32 module reference max abs err {err2}"

    print("KERNEL_OK")
</pallas_src>

<mosaic_0001>
module attributes {stable_mosaic.version = 11 : i64} {
  func.func @dnn_kernel(%arg0: i32, %arg1: memref<384x32xf32, #tpu.memory_space<vmem>>, %arg2: memref<32x128xbf16, #tpu.memory_space<vmem>>, %arg3: memref<1x128xf32, #tpu.memory_space<vmem>>, %arg4: memref<128x64xbf16, #tpu.memory_space<vmem>>, %arg5: memref<1x64xf32, #tpu.memory_space<vmem>>, %arg6: memref<64x32xbf16, #tpu.memory_space<vmem>>, %arg7: memref<1x32xf32, #tpu.memory_space<vmem>>, %arg8: memref<32x1xbf16, #tpu.memory_space<vmem>>, %arg9: memref<1x1xf32, #tpu.memory_space<vmem>>, %arg10: memref<384x1xf32, #tpu.memory_space<vmem>>) attributes {dimension_semantics = [#tpu.dimension_semantics<parallel>], iteration_bounds = array<i64: 1>, scalar_prefetch = 0 : i64, scratch_operands = 0 : i64, tpu.core_type = #tpu.core_type<tc>, window_params = [{transform_indices = @transform_0, window_bounds = array<i64: 384, 32>}, {pipeline_mode = #tpu.pipeline_mode<synchronous>, transform_indices = @transform_1, window_bounds = array<i64: 32, 128>}, {pipeline_mode = #tpu.pipeline_mode<synchronous>, transform_indices = @transform_2, window_bounds = array<i64: 1, 128>}, {pipeline_mode = #tpu.pipeline_mode<synchronous>, transform_indices = @transform_3, window_bounds = array<i64: 128, 64>}, {pipeline_mode = #tpu.pipeline_mode<synchronous>, transform_indices = @transform_4, window_bounds = array<i64: 1, 64>}, {pipeline_mode = #tpu.pipeline_mode<synchronous>, transform_indices = @transform_5, window_bounds = array<i64: 64, 32>}, {pipeline_mode = #tpu.pipeline_mode<synchronous>, transform_indices = @transform_6, window_bounds = array<i64: 1, 32>}, {pipeline_mode = #tpu.pipeline_mode<synchronous>, transform_indices = @transform_7, window_bounds = array<i64: 32, 1>}, {pipeline_mode = #tpu.pipeline_mode<synchronous>, transform_indices = @transform_8, window_bounds = array<i64: 1, 1>}, {transform_indices = @transform_9, window_bounds = array<i64: 384, 1>}]} {
    %c0 = arith.constant 0 : index
    %c0_0 = arith.constant 0 : index
    %0 = vector.load %arg1[%c0, %c0_0] : memref<384x32xf32, #tpu.memory_space<vmem>>, vector<384x32xf32>
    %1 = arith.truncf %0 : vector<384x32xf32> to vector<384x32xbf16>
    %c0_1 = arith.constant 0 : index
    %c0_2 = arith.constant 0 : index
    %2 = vector.load %arg2[%c0_1, %c0_2] : memref<32x128xbf16, #tpu.memory_space<vmem>>, vector<32x128xbf16>
    %cst = arith.constant dense<0.000000e+00> : vector<384x128xf32>
    %3 = tpu.matmul %1, %2, %cst {dimension_numbers = #tpu.dot_dimension_numbers<[1], [0], [0], [1], [0, 0, 1, 1], [], []>} : vector<384x32xbf16>, vector<32x128xbf16>, vector<384x128xf32> -> vector<384x128xf32>
    %c0_3 = arith.constant 0 : index
    %c0_4 = arith.constant 0 : index
    %4 = vector.load %arg3[%c0_3, %c0_4] : memref<1x128xf32, #tpu.memory_space<vmem>>, vector<1x128xf32>
    %5 = vector.broadcast %4 : vector<1x128xf32> to vector<384x128xf32>
    %6 = arith.addf %3, %5 : vector<384x128xf32>
    %cst_5 = arith.constant 0.000000e+00 : f32
    %7 = vector.broadcast %cst_5 : f32 to vector<384x128xf32>
    %8 = arith.maximumf %6, %7 : vector<384x128xf32>
    %9 = arith.truncf %8 : vector<384x128xf32> to vector<384x128xbf16>
    %c0_6 = arith.constant 0 : index
    %c0_7 = arith.constant 0 : index
    %10 = vector.load %arg4[%c0_6, %c0_7] : memref<128x64xbf16, #tpu.memory_space<vmem>>, vector<128x64xbf16>
    %cst_8 = arith.constant dense<0.000000e+00> : vector<384x64xf32>
    %11 = tpu.matmul %9, %10, %cst_8 {dimension_numbers = #tpu.dot_dimension_numbers<[1], [0], [0], [1], [0, 0, 1, 1], [], []>} : vector<384x128xbf16>, vector<128x64xbf16>, vector<384x64xf32> -> vector<384x64xf32>
    %c0_9 = arith.constant 0 : index
    %c0_10 = arith.constant 0 : index
    %12 = vector.load %arg5[%c0_9, %c0_10] : memref<1x64xf32, #tpu.memory_space<vmem>>, vector<1x64xf32>
    %13 = vector.broadcast %12 : vector<1x64xf32> to vector<384x64xf32>
    %14 = arith.addf %11, %13 : vector<384x64xf32>
    %cst_11 = arith.constant 0.000000e+00 : f32
    %15 = vector.broadcast %cst_11 : f32 to vector<384x64xf32>
    %16 = arith.maximumf %14, %15 : vector<384x64xf32>
    %17 = arith.truncf %16 : vector<384x64xf32> to vector<384x64xbf16>
    %c0_12 = arith.constant 0 : index
    %c0_13 = arith.constant 0 : index
    %18 = vector.load %arg6[%c0_12, %c0_13] : memref<64x32xbf16, #tpu.memory_space<vmem>>, vector<64x32xbf16>
    %cst_14 = arith.constant dense<0.000000e+00> : vector<384x32xf32>
    %19 = tpu.matmul %17, %18, %cst_14 {dimension_numbers = #tpu.dot_dimension_numbers<[1], [0], [0], [1], [0, 0, 1, 1], [], []>} : vector<384x64xbf16>, vector<64x32xbf16>, vector<384x32xf32> -> vector<384x32xf32>
    %c0_15 = arith.constant 0 : index
    %c0_16 = arith.constant 0 : index
    %20 = vector.load %arg7[%c0_15, %c0_16] : memref<1x32xf32, #tpu.memory_space<vmem>>, vector<1x32xf32>
    %21 = vector.broadcast %20 : vector<1x32xf32> to vector<384x32xf32>
    %22 = arith.addf %19, %21 : vector<384x32xf32>
    %cst_17 = arith.constant 0.000000e+00 : f32
    %23 = vector.broadcast %cst_17 : f32 to vector<384x32xf32>
    %24 = arith.maximumf %22, %23 : vector<384x32xf32>
    %25 = arith.truncf %24 : vector<384x32xf32> to vector<384x32xbf16>
    %c0_18 = arith.constant 0 : index
    %c0_19 = arith.constant 0 : index
    %26 = vector.load %arg8[%c0_18, %c0_19] : memref<32x1xbf16, #tpu.memory_space<vmem>>, vector<32x1xbf16>
    %cst_20 = arith.constant dense<0.000000e+00> : vector<384x1xf32>
    %27 = tpu.matmul %25, %26, %cst_20 {dimension_numbers = #tpu.dot_dimension_numbers<[1], [0], [0], [1], [0, 0, 1, 1], [], []>} : vector<384x32xbf16>, vector<32x1xbf16>, vector<384x1xf32> -> vector<384x1xf32>
    %c0_21 = arith.constant 0 : index
    %c0_22 = arith.constant 0 : index
    %28 = vector.load %arg9[%c0_21, %c0_22] : memref<1x1xf32, #tpu.memory_space<vmem>>, vector<1x1xf32>
    %29 = vector.broadcast %28 : vector<1x1xf32> to vector<384x1xf32>
    %30 = arith.addf %27, %29 : vector<384x1xf32>
    %cst_23 = arith.constant 0.000000e+00 : f32
    %31 = vector.broadcast %cst_23 : f32 to vector<384x1xf32>
    %32 = arith.subf %31, %30 : vector<384x1xf32>
    %33 = math.exp %32 : vector<384x1xf32>
    %cst_24 = arith.constant 1.000000e+00 : f32
    %34 = vector.broadcast %cst_24 : f32 to vector<384x1xf32>
    %35 = arith.addf %34, %33 : vector<384x1xf32>
    %36 = tpu.reciprocal %35 {approx = true} : vector<384x1xf32> -> vector<384x1xf32>
    %c0_25 = arith.constant 0 : index
    %c0_26 = arith.constant 0 : index
    %37 = vector.load %arg10[%c0_25, %c0_26] : memref<384x1xf32, #tpu.memory_space<vmem>>, vector<384x1xf32>
    tpu.vector_store %arg10[%c0_25, %c0_26], %36 {strides = array<i32>} : memref<384x1xf32, #tpu.memory_space<vmem>>, vector<384x1xf32>,
    return
  }
  func.func @transform_0(%arg0: i32) -> (i32, i32) {
    %c0_i32 = arith.constant 0 : i32
    %c0_i32_0 = arith.constant 0 : i32
    return %arg0, %c0_i32 : i32, i32
  }
  func.func @transform_1(%arg0: i32) -> (i32, i32) {
    %c0_i32 = arith.constant 0 : i32
    %c0_i32_0 = arith.constant 0 : i32
    %c0_i32_1 = arith.constant 0 : i32
    return %c0_i32, %c0_i32_0 : i32, i32
  }
  func.func @transform_2(%arg0: i32) -> (i32, i32) {
    %c0_i32 = arith.constant 0 : i32
    %c0_i32_0 = arith.constant 0 : i32
    %c0_i32_1 = arith.constant 0 : i32
    return %c0_i32, %c0_i32_0 : i32, i32
  }
  func.func @transform_3(%arg0: i32) -> (i32, i32) {
    %c0_i32 = arith.constant 0 : i32
    %c0_i32_0 = arith.constant 0 : i32
    %c0_i32_1 = arith.constant 0 : i32
    return %c0_i32, %c0_i32_0 : i32, i32
  }
  func.func @transform_4(%arg0: i32) -> (i32, i32) {
    %c0_i32 = arith.constant 0 : i32
    %c0_i32_0 = arith.constant 0 : i32
    %c0_i32_1 = arith.constant 0 : i32
    return %c0_i32, %c0_i32_0 : i32, i32
  }
  func.func @transform_5(%arg0: i32) -> (i32, i32) {
    %c0_i32 = arith.constant 0 : i32
    %c0_i32_0 = arith.constant 0 : i32
    %c0_i32_1 = arith.constant 0 : i32
    return %c0_i32, %c0_i32_0 : i32, i32
  }
  func.func @transform_6(%arg0: i32) -> (i32, i32) {
    %c0_i32 = arith.constant 0 : i32
    %c0_i32_0 = arith.constant 0 : i32
    %c0_i32_1 = arith.constant 0 : i32
    return %c0_i32, %c0_i32_0 : i32, i32
  }
  func.func @transform_7(%arg0: i32) -> (i32, i32) {
    %c0_i32 = arith.constant 0 : i32
    %c0_i32_0 = arith.constant 0 : i32
    %c0_i32_1 = arith.constant 0 : i32
    return %c0_i32, %c0_i32_0 : i32, i32
  }
  func.func @transform_8(%arg0: i32) -> (i32, i32) {
    %c0_i32 = arith.constant 0 : i32
    %c0_i32_0 = arith.constant 0 : i32
    %c0_i32_1 = arith.constant 0 : i32
    return %c0_i32, %c0_i32_0 : i32, i32
  }
  func.func @transform_9(%arg0: i32) -> (i32, i32) {
    %c0_i32 = arith.constant 0 : i32
    %c0_i32_0 = arith.constant 0 : i32
    return %arg0, %c0_i32 : i32, i32
  }
}

</mosaic_0001>

<llo_original>
// kernel: ddos_mlp_forward.1
$region0: #{ddos_mlp_forward.1}
  #allocation0 [shape = 'u32[]', space=smem, size = 0x4, offset = 0x4, fixed_abs, tag = 'smem constant byte address 0x4 - core index']
  #allocation1 [shape = 'u32[144,128]{1,0:T(1,128)}', space=vmem, size = 0x12000, scoped, tag = 'internal scratch']
  #allocation2 [shape = 'f32[1,1]{1,0:T(1,128)S(1)}', space=vmem, size = 0x200, scoped, tag = 'scoped memory for ddos_mlp_forward.1']
  %s0 = inlined_call_operand.vmem [shape: f32[384,32], index: 0, kind: input, shape index: {}]
  %s1 = inlined_call_operand.vmem [shape: bf16[32,128], index: 1, kind: input, shape index: {}]
  %s2 = inlined_call_operand.vmem [shape: f32[1,128], index: 2, kind: input, shape index: {}]
  %s3 = inlined_call_operand.vmem [shape: bf16[128,64], index: 3, kind: input, shape index: {}]
  %s4 = inlined_call_operand.vmem [shape: f32[1,64], index: 4, kind: input, shape index: {}]
  %s5 = inlined_call_operand.vmem [shape: bf16[64,32], index: 5, kind: input, shape index: {}]
  %s6 = inlined_call_operand.vmem [shape: f32[1,32], index: 6, kind: input, shape index: {}]
  %s7 = inlined_call_operand.vmem [shape: bf16[32,1], index: 7, kind: input, shape index: {}]
  %s8 = inlined_call_operand.<no memory space> [shape: f32[1,1], index: 8, kind: input, shape index: {}]
  %s9 = inlined_call_operand.vmem [shape: f32[384,1], index: 9, kind: output, shape index: {}]
  %s10 = sld [smem:[#allocation0]]
  $region46: #{ddos_mlp_forward.1} parent=0
    _
  %s12 = ssub.s32 1, %s10
  %s13 = scalar_select 0, %s12, %s10
  %v14 = vstv %s8
  %15 = vst [vmem:[#allocation2] sm:$0x1] %v14
  // Predicated region
  $region2: #{ddos_mlp_forward.1} parent=0 // pred_check
    _
  $region3: #{ddos_mlp_forward.1} parent=0 // pred_check_branch
    %17 = sbr.rel (0) target = $region5
  $region4: #{ddos_mlp_forward.1} parent=0 // pred_region
    _
  $region5: #{ddos_mlp_forward.1} parent=0 // pred_fallthru
    _
  // Predicated region
  $region6: #{ddos_mlp_forward.1} parent=0 // pred_check
    _
  $region7: #{ddos_mlp_forward.1} parent=0 // pred_check_branch
    %19 = sbr.rel (0) target = $region9
  $region8: #{ddos_mlp_forward.1} parent=0 // pred_region
    _
  $region9: #{ddos_mlp_forward.1} parent=0 // pred_fallthru
    _
  // Predicated region
  $region10: #{ddos_mlp_forward.1} parent=0 // pred_check
    _
  $region11: #{ddos_mlp_forward.1} parent=0 // pred_check_branch
    %21 = sbr.rel (0) target = $region13
  $region12: #{ddos_mlp_forward.1} parent=0 // pred_region
    _
  $region13: #{ddos_mlp_forward.1} parent=0 // pred_fallthru
    _
  // Predicated region
  $region14: #{ddos_mlp_forward.1} parent=0 // pred_check
    _
  $region15: #{ddos_mlp_forward.1} parent=0 // pred_check_branch
    %23 = sbr.rel (0) target = $region17
  $region16: #{ddos_mlp_forward.1} parent=0 // pred_region
    _
  $region17: #{ddos_mlp_forward.1} parent=0 // pred_fallthru
    _
  // Predicated region
  $region18: #{ddos_mlp_forward.1} parent=0 // pred_check
    _
  $region19: #{ddos_mlp_forward.1} parent=0 // pred_check_branch
    %25 = sbr.rel (0) target = $region21
  $region20: #{ddos_mlp_forward.1} parent=0 // pred_region
    _
  $region21: #{ddos_mlp_forward.1} parent=0 // pred_fallthru
    _
  // Predicated region
  $region22: #{ddos_mlp_forward.1} parent=0 // pred_check
    _
  $region23: #{ddos_mlp_forward.1} parent=0 // pred_check_branch
    %27 = sbr.rel (0) target = $region25
  $region24: #{ddos_mlp_forward.1} parent=0 // pred_region
    _
  $region25: #{ddos_mlp_forward.1} parent=0 // pred_fallthru
    _
  // Predicated region
  $region26: #{ddos_mlp_forward.1} parent=0 // pred_check
    _
  $region27: #{ddos_mlp_forward.1} parent=0 // pred_check_branch
    %29 = sbr.rel (0) target = $region29
  $region28: #{ddos_mlp_forward.1} parent=0 // pred_region
    _
  $region29: #{ddos_mlp_forward.1} parent=0 // pred_fallthru
    _
  // Predicated region
  $region30: #{ddos_mlp_forward.1} parent=0 // pred_check
    _
  $region31: #{ddos_mlp_forward.1} parent=0 // pred_check_branch
    %31 = sbr.rel (0) target = $region33
  $region32: #{ddos_mlp_forward.1} parent=0 // pred_region
    _
  $region33: #{ddos_mlp_forward.1} parent=0 // pred_fallthru
    _
  // Predicated region
  $region34: #{ddos_mlp_forward.1} parent=0 // pred_check
    _
  $region35: #{ddos_mlp_forward.1} parent=0 // pred_check_branch
    %33 = sbr.rel (0) target = $region37
  $region36: #{ddos_mlp_forward.1} parent=0 // pred_region
    _
  $region37: #{ddos_mlp_forward.1} parent=0 // pred_fallthru
    _
  %v35 = vld [vmem:[%s0] sm:$0xff]
  %v36 = vld [vmem:[%s0 + $0x8] sm:$0xff]
  %v37 = vld [vmem:[%s0 + $0x10] sm:$0xff]
  %v38 = vld [vmem:[%s0 + $0x18] sm:$0xff]
  %v39 = vld [vmem:[%s0 + $0x20] sm:$0xff]
  %v40 = vld [vmem:[%s0 + $0x28] sm:$0xff]
  %v41 = vld [vmem:[%s0 + $0x30] sm:$0xff]
  %v42 = vld [vmem:[%s0 + $0x38] sm:$0xff]
  %v43 = vld [vmem:[%s0 + $0x40] sm:$0xff]
  %v44 = vld [vmem:[%s0 + $0x48] sm:$0xff]
  %v45 = vld [vmem:[%s0 + $0x50] sm:$0xff]
  %v46 = vld [vmem:[%s0 + $0x58] sm:$0xff]
  %v47 = vld [vmem:[%s0 + $0x60] sm:$0xff]
  %v48 = vld [vmem:[%s0 + $0x68] sm:$0xff]
  %v49 = vld [vmem:[%s0 + $0x70] sm:$0xff]
  %v50 = vld [vmem:[%s0 + $0x78] sm:$0xff]
  %v51 = vld [vmem:[%s0 + $0x80] sm:$0xff]
  %v52 = vld [vmem:[%s0 + $0x88] sm:$0xff]
  %v53 = vld [vmem:[%s0 + $0x90] sm:$0xff]
  %v54 = vld [vmem:[%s0 + $0x98] sm:$0xff]
  %v55 = vld [vmem:[%s0 + $0xa0] sm:$0xff]
  %v56 = vld [vmem:[%s0 + $0xa8] sm:$0xff]
  %v57 = vld [vmem:[%s0 + $0xb0] sm:$0xff]
  %v58 = vld [vmem:[%s0 + $0xb8] sm:$0xff]
  %v59 = vld [vmem:[%s0 + $0xc0] sm:$0xff]
  %v60 = vld [vmem:[%s0 + $0xc8] sm:$0xff]
  %v61 = vld [vmem:[%s0 + $0xd0] sm:$0xff]
  %v62 = vld [vmem:[%s0 + $0xd8] sm:$0xff]
  %v63 = vld [vmem:[%s0 + $0xe0] sm:$0xff]
  %v64 = vld [vmem:[%s0 + $0xe8] sm:$0xff]
  %v65 = vld [vmem:[%s0 + $0xf0] sm:$0xff]
  %v66 = vld [vmem:[%s0 + $0xf8] sm:$0xff]
  %v67 = vld [vmem:[%s0 + $0x100] sm:$0xff]
  %v68 = vld [vmem:[%s0 + $0x108] sm:$0xff]
  %v69 = vld [vmem:[%s0 + $0x110] sm:$0xff]
  %v70 = vld [vmem:[%s0 + $0x118] sm:$0xff]
  %v71 = vld [vmem:[%s0 + $0x120] sm:$0xff]
  %v72 = vld [vmem:[%s0 + $0x128] sm:$0xff]
  %v73 = vld [vmem:[%s0 + $0x130] sm:$0xff]
  %v74 = vld [vmem:[%s0 + $0x138] sm:$0xff]
  %v75 = vld [vmem:[%s0 + $0x140] sm:$0xff]
  %v76 = vld [vmem:[%s0 + $0x148] sm:$0xff]
  %v77 = vld [vmem:[%s0 + $0x150] sm:$0xff]
  %v78 = vld [vmem:[%s0 + $0x158] sm:$0xff]
  %v79 = vld [vmem:[%s0 + $0x160] sm:$0xff]
  %v80 = vld [vmem:[%s0 + $0x168] sm:$0xff]
  %v81 = vld [vmem:[%s0 + $0x170] sm:$0xff]
  %v82 = vld [vmem:[%s0 + $0x178] sm:$0xff]
  %v83 = vpack.c.bf16 %v36, %v35
  %v84 = vpack.c.bf16 %v38, %v37
  %v85 = vpack.c.bf16 %v40, %v39
  %v86 = vpack.c.bf16 %v42, %v41
  %v87 = vpack.c.bf16 %v44, %v43
  %v88 = vpack.c.bf16 %v46, %v45
  %v89 = vpack.c.bf16 %v48, %v47
  %v90 = vpack.c.bf16 %v50, %v49
  %v91 = vpack.c.bf16 %v52, %v51
  %v92 = vpack.c.bf16 %v54, %v53
  %v93 = vpack.c.bf16 %v56, %v55
  %v94 = vpack.c.bf16 %v58, %v57
  %v95 = vpack.c.bf16 %v60, %v59
  %v96 = vpack.c.bf16 %v62, %v61
  %v97 = vpack.c.bf16 %v64, %v63
  %v98 = vpack.c.bf16 %v66, %v65
  %v99 = vpack.c.bf16 %v68, %v67
  %v100 = vpack.c.bf16 %v70, %v69
  %v101 = vpack.c.bf16 %v72, %v71
  %v102 = vpack.c.bf16 %v74, %v73
  %v103 = vpack.c.bf16 %v76, %v75
  %v104 = vpack.c.bf16 %v78, %v77
  %v105 = vpack.c.bf16 %v80, %v79
  %v106 = vpack.c.bf16 %v82, %v81
  %v107 = vld [vmem:[%s1] sm:$0xf]
  %v108 = vld [vmem:[%s1 + $0x4] sm:$0xf]
  %v109 = vld [vmem:[%s1 + $0x8] sm:$0xf]
  %v110 = vld [vmem:[%s1 + $0xc] sm:$0xf]
  %v111 = vld [vmem:[%s2] sm:$0x1]
  %v113 = vlaneseq
  %v114 = vshrl.u32 %v113, 7
  %v115 = vsub.s32 0, %v114
  %v116 = vrot.slane %v111, %v115
  %v122 = vunpack.c.l.b16 %v107
  %v123 = vunpack.c.l.b16 %v108
  %v124 = vunpack.c.l.b16 %v109
  %v125 = vunpack.c.l.b16 %v110
  %v126 = vpack.c.b16 %v123, %v122
  %v127 = vpack.c.b16 %v125, %v124
  %vm130 = vcmask 261120
  %v132 = vsel %vm130, %v83, 0
  %v135 = vsel %vm130, %v84, 0
  %v138 = vsel %vm130, %v85, 0
  %v141 = vsel %vm130, %v86, 0
  %v144 = vsel %vm130, %v87, 0
  %v147 = vsel %vm130, %v88, 0
  %v150 = vsel %vm130, %v89, 0
  %v153 = vsel %vm130, %v90, 0
  %v156 = vsel %vm130, %v91, 0
  %v159 = vsel %vm130, %v92, 0
  %v162 = vsel %vm130, %v93, 0
  %v165 = vsel %vm130, %v94, 0
  %v168 = vsel %vm130, %v95, 0
  %v171 = vsel %vm130, %v96, 0
  %v174 = vsel %vm130, %v97, 0
  %v177 = vsel %vm130, %v98, 0
  %v180 = vsel %vm130, %v99, 0
  %v183 = vsel %vm130, %v100, 0
  %v186 = vsel %vm130, %v101, 0
  %v189 = vsel %vm130, %v102, 0
  %v192 = vsel %vm130, %v103, 0
  %v195 = vsel %vm130, %v104, 0
  %v198 = vsel %vm130, %v105, 0
  %v201 = vsel %vm130, %v106, 0
  %203 = vmatprep.subr.bf16.mxu0 0
  %204 = vmatpush1.bf16.msra.mxu0 %v126
  %205 = vmatprep.subr.bf16.mxu0 0
  %206 = vmatpush1.bf16.msra.mxu0 %v127
  %207 = vmatprep.subr.bf16.mxu0 0
  %208 = vmatpush1.bf16.msra.mxu0 0
  %209 = vmatprep.subr.bf16.mxu0 0
  %210 = vmatpush1.bf16.msra.mxu0 0
  %211 = vmatprep.subr.bf16.mxu0 0
  %212 = vmatpush1.bf16.msra.mxu0 0
  %213 = vmatprep.subr.bf16.mxu0 0
  %214 = vmatpush1.bf16.msra.mxu0 0
  %215 = vmatprep.subr.bf16.mxu0 0
  %216 = vmatpush1.bf16.msra.mxu0 0
  %217 = vmatprep.subr.bf16.mxu0 0
  %218 = vmatpush1.bf16.msra.mxu0 0
  %219 = vmatprep.subr.bf16.mxu0 0
  %220 = vmatpush1.bf16.msra.mxu0 0
  %221 = vmatprep.subr.bf16.mxu0 0
  %222 = vmatpush1.bf16.msra.mxu0 0
  %223 = vmatprep.subr.bf16.mxu0 0
  %224 = vmatpush1.bf16.msra.mxu0 0
  %225 = vmatprep.subr.bf16.mxu0 0
  %226 = vmatpush1.bf16.msra.mxu0 0
  %227 = vmatprep.subr.bf16.mxu0 0
  %228 = vmatpush1.bf16.msra.mxu0 0
  %229 = vmatprep.subr.bf16.mxu0 0
  %230 = vmatpush1.bf16.msra.mxu0 0
  %231 = vmatprep.subr.bf16.mxu0 0
  %232 = vmatpush1.bf16.msra.mxu0 0
  %233 = vmatprep.subr.bf16.mxu0 0
  %234 = vmatpush1.bf16.msra.mxu0 0
  %235 = vmatprep.mubr.bf16.mxu0 0
  %236 = vmatmul.mubr.bf16.gmra.mrb[0].mxu0 %v132
  %v237 = vpop.f32.mrb[0].mxu0
  %v238 = vadd.f32 %v116, %v237
  %v239 = vpop.f32.mrb[0].mxu0
  %v240 = vpop.f32.mrb[0].mxu0
  %v241 = vadd.f32 %v116, %v240
  %v242 = vpop.f32.mrb[0].mxu0
  %243 = vmatprep.mubr.bf16.mxu0 0
  %244 = vmatmul.mubr.bf16.gmra.mrb[0].mxu0 %v135
  %v245 = vpop.f32.mrb[0].mxu0
  %v246 = vadd.f32 %v116, %v245
  %v247 = vpop.f32.mrb[0].mxu0
  %v248 = vpop.f32.mrb[0].mxu0
  %v249 = vadd.f32 %v116, %v248
  %v250 = vpop.f32.mrb[0].mxu0
  %251 = vmatprep.mubr.bf16.mxu0 0
  %252 = vmatmul.mubr.bf16.gmra.mrb[0].mxu0 %v138
  %v253 = vpop.f32.mrb[0].mxu0
  %v254 = vadd.f32 %v116, %v253
  %v255 = vpop.f32.mrb[0].mxu0
  %v256 = vpop.f32.mrb[0].mxu0
  %v257 = vadd.f32 %v116, %v256
  %v258 = vpop.f32.mrb[0].mxu0
  %259 = vmatprep.mubr.bf16.mxu0 0
  %260 = vmatmul.mubr.bf16.gmra.mrb[0].mxu0 %v141
  %v261 = vpop.f32.mrb[0].mxu0
  %v262 = vadd.f32 %v116, %v261
  %v263 = vpop.f32.mrb[0].mxu0
  %v264 = vpop.f32.mrb[0].mxu0
  %v265 = vadd.f32 %v116, %v264
  %v266 = vpop.f32.mrb[0].mxu0
  %267 = vmatprep.mubr.bf16.mxu0 0
  %268 = vmatmul.mubr.bf16.gmra.mrb[0].mxu0 %v144
  %v269 = vpop.f32.mrb[0].mxu0
  %v270 = vadd.f32 %v116, %v269
  %v271 = vpop.f32.mrb[0].mxu0
  %v272 = vpop.f32.mrb[0].mxu0
  %v273 = vadd.f32 %v116, %v272
  %v274 = vpop.f32.mrb[0].mxu0
  %275 = vmatprep.mubr.bf16.mxu0 0
  %276 = vmatmul.mubr.bf16.gmra.mrb[0].mxu0 %v147
  %v277 = vpop.f32.mrb[0].mxu0
  %v278 = vadd.f32 %v116, %v277
  %v279 = vpop.f32.mrb[0].mxu0
  %v280 = vpop.f32.mrb[0].mxu0
  %v281 = vadd.f32 %v116, %v280
  %v282 = vpop.f32.mrb[0].mxu0
  %283 = vmatprep.mubr.bf16.mxu0 0
  %284 = vmatmul.mubr.bf16.gmra.mrb[0].mxu0 %v150
  %v285 = vpop.f32.mrb[0].mxu0
  %v286 = vadd.f32 %v116, %v285
  %v287 = vpop.f32.mrb[0].mxu0
  %v288 = vpop.f32.mrb[0].mxu0
  %v289 = vadd.f32 %v116, %v288
  %v290 = vpop.f32.mrb[0].mxu0
  %291 = vmatprep.mubr.bf16.mxu0 0
  %292 = vmatmul.mubr.bf16.gmra.mrb[0].mxu0 %v153
  %v293 = vpop.f32.mrb[0].mxu0
  %v294 = vadd.f32 %v116, %v293
  %v295 = vpop.f32.mrb[0].mxu0
  %v296 = vpop.f32.mrb[0].mxu0
  %v297 = vadd.f32 %v116, %v296
  %v298 = vpop.f32.mrb[0].mxu0
  %299 = vmatprep.mubr.bf16.mxu0 0
  %300 = vmatmul.mubr.bf16.gmra.mrb[0].mxu0 %v156
  %v301 = vpop.f32.mrb[0].mxu0
  %v302 = vadd.f32 %v116, %v301
  %v303 = vpop.f32.mrb[0].mxu0
  %v304 = vpop.f32.mrb[0].mxu0
  %v305 = vadd.f32 %v116, %v304
  %v306 = vpop.f32.mrb[0].mxu0
  %307 = vmatprep.mubr.bf16.mxu0 0
  %308 = vmatmul.mubr.bf16.gmra.mrb[0].mxu0 %v159
  %v309 = vpop.f32.mrb[0].mxu0
  %v310 = vadd.f32 %v116, %v309
  %v311 = vpop.f32.mrb[0].mxu0
  %v312 = vpop.f32.mrb[0].mxu0
  %v313 = vadd.f32 %v116, %v312
  %v314 = vpop.f32.mrb[0].mxu0
  %315 = vmatprep.mubr.bf16.mxu0 0
  %316 = vmatmul.mubr.bf16.gmra.mrb[0].mxu0 %v162
  %v317 = vpop.f32.mrb[0].mxu0
  %v318 = vadd.f32 %v116, %v317
  %v319 = vpop.f32.mrb[0].mxu0
  %v320 = vpop.f32.mrb[0].mxu0
  %v321 = vadd.f32 %v116, %v320
  %v322 = vpop.f32.mrb[0].mxu0
  %323 = vmatprep.mubr.bf16.mxu0 0
  %324 = vmatmul.mubr.bf16.gmra.mrb[0].mxu0 %v165
  %v325 = vpop.f32.mrb[0].mxu0
  %v326 = vadd.f32 %v116, %v325
  %v327 = vpop.f32.mrb[0].mxu0
  %v328 = vpop.f32.mrb[0].mxu0
  %v329 = vadd.f32 %v116, %v328
  %v330 = vpop.f32.mrb[0].mxu0
  %331 = vmatprep.mubr.bf16.mxu0 0
  %332 = vmatmul.mubr.bf16.gmra.mrb[0].mxu0 %v168
  %v333 = vpop.f32.mrb[0].mxu0
  %v334 = vadd.f32 %v116, %v333
  %v335 = vpop.f32.mrb[0].mxu0
  %v336 = vpop.f32.mrb[0].mxu0
  %v337 = vadd.f32 %v116, %v336
  %v338 = vpop.f32.mrb[0].mxu0
  %339 = vmatprep.mubr.bf16.mxu0 0
  %340 = vmatmul.mubr.bf16.gmra.mrb[0].mxu0 %v171
  %v341 = vpop.f32.mrb[0].mxu0
  %v342 = vadd.f32 %v116, %v341
  %v343 = vpop.f32.mrb[0].mxu0
  %v344 = vpop.f32.mrb[0].mxu0
  %v345 = vadd.f32 %v116, %v344
  %v346 = vpop.f32.mrb[0].mxu0
  %347 = vmatprep.mubr.bf16.mxu0 0
  %348 = vmatmul.mubr.bf16.gmra.mrb[0].mxu0 %v174
  %v349 = vpop.f32.mrb[0].mxu0
  %v350 = vadd.f32 %v116, %v349
  %v351 = vpop.f32.mrb[0].mxu0
  %v352 = vpop.f32.mrb[0].mxu0
  %v353 = vadd.f32 %v116, %v352
  %v354 = vpop.f32.mrb[0].mxu0
  %355 = vmatprep.mubr.bf16.mxu0 0
  %356 = vmatmul.mubr.bf16.gmra.mrb[0].mxu0 %v177
  %v357 = vpop.f32.mrb[0].mxu0
  %v358 = vadd.f32 %v116, %v357
  %v359 = vpop.f32.mrb[0].mxu0
  %v360 = vpop.f32.mrb[0].mxu0
  %v361 = vadd.f32 %v116, %v360
  %v362 = vpop.f32.mrb[0].mxu0
  %363 = vmatprep.mubr.bf16.mxu0 0
  %364 = vmatmul.mubr.bf16.gmra.mrb[0].mxu0 %v180
  %v365 = vpop.f32.mrb[0].mxu0
  %v366 = vadd.f32 %v116, %v365
  %v367 = vpop.f32.mrb[0].mxu0
  %v368 = vpop.f32.mrb[0].mxu0
  %v369 = vadd.f32 %v116, %v368
  %v370 = vpop.f32.mrb[0].mxu0
  %371 = vmatprep.mubr.bf16.mxu0 0
  %372 = vmatmul.mubr.bf16.gmra.mrb[0].mxu0 %v183
  %v373 = vpop.f32.mrb[0].mxu0
  %v374 = vadd.f32 %v116, %v373
  %v375 = vpop.f32.mrb[0].mxu0
  %v376 = vpop.f32.mrb[0].mxu0
  %v377 = vadd.f32 %v116, %v376
  %v378 = vpop.f32.mrb[0].mxu0
  %379 = vmatprep.mubr.bf16.mxu0 0
  %380 = vmatmul.mubr.bf16.gmra.mrb[0].mxu0 %v186
  %v381 = vpop.f32.mrb[0].mxu0
  %v382 = vadd.f32 %v116, %v381
  %v383 = vpop.f32.mrb[0].mxu0
  %v384 = vpop.f32.mrb[0].mxu0
  %v385 = vadd.f32 %v116, %v384
  %v386 = vpop.f32.mrb[0].mxu0
  %387 = vmatprep.mubr.bf16.mxu0 0
  %388 = vmatmul.mubr.bf16.gmra.mrb[0].mxu0 %v189
  %v389 = vpop.f32.mrb[0].mxu0
  %v390 = vadd.f32 %v116, %v389
  %v391 = vpop.f32.mrb[0].mxu0
  %v392 = vpop.f32.mrb[0].mxu0
  %v393 = vadd.f32 %v116, %v392
  %v394 = vpop.f32.mrb[0].mxu0
  %395 = vmatprep.mubr.bf16.mxu0 0
  %396 = vmatmul.mubr.bf16.gmra.mrb[0].mxu0 %v192
  %v397 = vpop.f32.mrb[0].mxu0
  %v398 = vadd.f32 %v116, %v397
  %v399 = vpop.f32.mrb[0].mxu0
  %v400 = vpop.f32.mrb[0].mxu0
  %v401 = vadd.f32 %v116, %v400
  %v402 = vpop.f32.mrb[0].mxu0
  %403 = vmatprep.mubr.bf16.mxu0 0
  %404 = vmatmul.mubr.bf16.gmra.mrb[0].mxu0 %v195
  %v405 = vpop.f32.mrb[0].mxu0
  %v406 = vadd.f32 %v116, %v405
  %v407 = vpop.f32.mrb[0].mxu0
  %v408 = vpop.f32.mrb[0].mxu0
  %v409 = vadd.f32 %v116, %v408
  %v410 = vpop.f32.mrb[0].mxu0
  %411 = vmatprep.mubr.bf16.mxu0 0
  %412 = vmatmul.mubr.bf16.gmra.mrb[0].mxu0 %v198
  %v413 = vpop.f32.mrb[0].mxu0
  %v414 = vadd.f32 %v116, %v413
  %v415 = vpop.f32.mrb[0].mxu0
  %v416 = vpop.f32.mrb[0].mxu0
  %v417 = vadd.f32 %v116, %v416
  %v418 = vpop.f32.mrb[0].mxu0
  %419 = vmatprep.mubr.bf16.mxu0 0
  %420 = vmatmul.mubr.bf16.gmra.mrb[0].mxu0 %v201
  %v421 = vpop.f32.mrb[0].mxu0
  %v422 = vadd.f32 %v116, %v421
  %v423 = vpop.f32.mrb[0].mxu0
  %v424 = vpop.f32.mrb[0].mxu0
  %v425 = vadd.f32 %v116, %v424
  %v426 = vpop.f32.mrb[0].mxu0
  %427 = vdwg.mxu0
  %v428 = vmax.f32 %v238, 0.0
  %v429 = vmax.f32 %v241, 0.0
  %v430 = vmax.f32 %v246, 0.0
  %v431 = vmax.f32 %v249, 0.0
  %v432 = vmax.f32 %v254, 0.0
  %v433 = vmax.f32 %v257, 0.0
  %v434 = vmax.f32 %v262, 0.0
  %v435 = vmax.f32 %v265, 0.0
  %v436 = vmax.f32 %v270, 0.0
  %v437 = vmax.f32 %v273, 0.0
  %v438 = vmax.f32 %v278, 0.0
  %v439 = vmax.f32 %v281, 0.0
  %v440 = vmax.f32 %v286, 0.0
  %v441 = vmax.f32 %v289, 0.0
  %v442 = vmax.f32 %v294, 0.0
  %v443 = vmax.f32 %v297, 0.0
  %v444 = vmax.f32 %v302, 0.0
  %v445 = vmax.f32 %v305, 0.0
  %v446 = vmax.f32 %v310, 0.0
  %v447 = vmax.f32 %v313, 0.0
  %v448 = vmax.f32 %v318, 0.0
  %v449 = vmax.f32 %v321, 0.0
  %v450 = vmax.f32 %v326, 0.0
  %v451 = vmax.f32 %v329, 0.0
  %v452 = vmax.f32 %v334, 0.0
  %v453 = vmax.f32 %v337, 0.0
  %v454 = vmax.f32 %v342, 0.0
  %v455 = vmax.f32 %v345, 0.0
  %v456 = vmax.f32 %v350, 0.0
  %v457 = vmax.f32 %v353, 0.0
  %v458 = vmax.f32 %v358, 0.0
  %v459 = vmax.f32 %v361, 0.0
  %v460 = vmax.f32 %v366, 0.0
  %v461 = vmax.f32 %v369, 0.0
  %v462 = vmax.f32 %v374, 0.0
  %v463 = vmax.f32 %v377, 0.0
  %v464 = vmax.f32 %v382, 0.0
  %v465 = vmax.f32 %v385, 0.0
  %v466 = vmax.f32 %v390, 0.0
  %v467 = vmax.f32 %v393, 0.0
  %v468 = vmax.f32 %v398, 0.0
  %v469 = vmax.f32 %v401, 0.0
  %v470 = vmax.f32 %v406, 0.0
  %v471 = vmax.f32 %v409, 0.0
  %v472 = vmax.f32 %v414, 0.0
  %v473 = vmax.f32 %v417, 0.0
  %v474 = vmax.f32 %v422, 0.0
  %v475 = vmax.f32 %v425, 0.0
  %v476 = vpack.c.bf16 %v429, %v428
  %v477 = vpack.c.bf16 %v431, %v430
  %v478 = vpack.c.bf16 %v433, %v432
  %v479 = vpack.c.bf16 %v435, %v434
  %v480 = vpack.c.bf16 %v437, %v436
  %v481 = vpack.c.bf16 %v439, %v438
  %v482 = vpack.c.bf16 %v441, %v440
  %v483 = vpack.c.bf16 %v443, %v442
  %v484 = vpack.c.bf16 %v445, %v444
  %v485 = vpack.c.bf16 %v447, %v446
  %v486 = vpack.c.bf16 %v449, %v448
  %v487 = vpack.c.bf16 %v451, %v450
  %v488 = vpack.c.bf16 %v453, %v452
  %v489 = vpack.c.bf16 %v455, %v454
  %v490 = vpack.c.bf16 %v457, %v456
  %v491 = vpack.c.bf16 %v459, %v458
  %v492 = vpack.c.bf16 %v461, %v460
  %v493 = vpack.c.bf16 %v463, %v462
  %v494 = vpack.c.bf16 %v465, %v464
  %v495 = vpack.c.bf16 %v467, %v466
  %v496 = vpack.c.bf16 %v469, %v468
  %v497 = vpack.c.bf16 %v471, %v470
  %v498 = vpack.c.bf16 %v473, %v472
  %v499 = vpack.c.bf16 %v475, %v474
  %v500 = vld [vmem:[%s3] sm:$0xf]
  %v501 = vld [vmem:[%s3 + $0x4] sm:$0xf]
  %v502 = vld [vmem:[%s3 + $0x8] sm:$0xf]
  %v503 = vld [vmem:[%s3 + $0xc] sm:$0xf]
  %v504 = vld [vmem:[%s3 + $0x10] sm:$0xf]
  %v505 = vld [vmem:[%s3 + $0x14] sm:$0xf]
  %v506 = vld [vmem:[%s3 + $0x18] sm:$0xf]
  %v507 = vld [vmem:[%s3 + $0x1c] sm:$0xf]
  %v508 = vld [vmem:[%s3 + $0x20] sm:$0xf]
  %v509 = vld [vmem:[%s3 + $0x24] sm:$0xf]
  %v510 = vld [vmem:[%s3 + $0x28] sm:$0xf]
  %v511 = vld [vmem:[%s3 + $0x2c] sm:$0xf]
  %v512 = vld [vmem:[%s3 + $0x30] sm:$0xf]
  %v513 = vld [vmem:[%s3 + $0x34] sm:$0xf]
  %v514 = vld [vmem:[%s3 + $0x38] sm:$0xf]
  %v515 = vld [vmem:[%s3 + $0x3c] sm:$0xf]
  %v516 = vld [vmem:[%s4] sm:$0x1]
  %v518 = vlaneseq
  %v519 = vshrl.u32 %v518, 7
  %v520 = vsub.s32 0, %v519
  %v521 = vrot.slane %v516, %v520
  %v539 = vunpack.c.l.b16 %v500
  %v540 = vunpack.c.l.b16 %v501
  %v541 = vunpack.c.l.b16 %v502
  %v542 = vunpack.c.l.b16 %v503
  %v543 = vunpack.c.l.b16 %v504
  %v544 = vunpack.c.l.b16 %v505
  %v545 = vunpack.c.l.b16 %v506
  %v546 = vunpack.c.l.b16 %v507
  %v547 = vunpack.c.l.b16 %v508
  %v548 = vunpack.c.l.b16 %v509
  %v549 = vunpack.c.l.b16 %v510
  %v550 = vunpack.c.l.b16 %v511
  %v551 = vunpack.c.l.b16 %v512
  %v552 = vunpack.c.l.b16 %v513
  %v553 = vunpack.c.l.b16 %v514
  %v554 = vunpack.c.l.b16 %v515
  %v555 = vpack.c.b16 %v540, %v539
  %v556 = vpack.c.b16 %v542, %v541
  %v557 = vpack.c.b16 %v544, %v543
  %v558 = vpack.c.b16 %v546, %v545
  %v559 = vpack.c.b16 %v548, %v547
  %v560 = vpack.c.b16 %v550, %v549
  %v561 = vpack.c.b16 %v552, %v551
  %v562 = vpack.c.b16 %v554, %v553
  %571 = vmatprep.subr.bf16.mxu0 0
  %572 = vmatpush1.bf16.msra.mxu0 %v555
  %573 = vmatprep.subr.bf16.mxu0 0
  %574 = vmatpush1.bf16.msra.mxu0 %v556
  %575 = vmatprep.subr.bf16.mxu0 0
  %576 = vmatpush1.bf16.msra.mxu0 %v557
  %577 = vmatprep.subr.bf16.mxu0 0
  %578 = vmatpush1.bf16.msra.mxu0 %v558
  %579 = vmatprep.subr.bf16.mxu0 0
  %580 = vmatpush1.bf16.msra.mxu0 %v559
  %581 = vmatprep.subr.bf16.mxu0 0
  %582 = vmatpush1.bf16.msra.mxu0 %v560
  %583 = vmatprep.subr.bf16.mxu0 0
  %584 = vmatpush1.bf16.msra.mxu0 %v561
  %585 = vmatprep.subr.bf16.mxu0 0
  %586 = vmatpush1.bf16.msra.mxu0 %v562
  %587 = vmatprep.subr.bf16.mxu0 0
  %588 = vmatpush1.bf16.msra.mxu0 0
  %589 = vmatprep.subr.bf16.mxu0 0
  %590 = vmatpush1.bf16.msra.mxu0 0
  %591 = vmatprep.subr.bf16.mxu0 0
  %592 = vmatpush1.bf16.msra.mxu0 0
  %593 = vmatprep.subr.bf16.mxu0 0
  %594 = vmatpush1.bf16.msra.mxu0 0
  %595 = vmatprep.subr.bf16.mxu0 0
  %596 = vmatpush1.bf16.msra.mxu0 0
  %597 = vmatprep.subr.bf16.mxu0 0
  %598 = vmatpush1.bf16.msra.mxu0 0
  %599 = vmatprep.subr.bf16.mxu0 0
  %600 = vmatpush1.bf16.msra.mxu0 0
  %601 = vmatprep.subr.bf16.mxu0 0
  %602 = vmatpush1.bf16.msra.mxu0 0
  %603 = vmatprep.mubr.bf16.mxu0 0
  %604 = vmatmul.mubr.bf16.gmra.mrb[0].mxu0 %v476
  %v605 = vpop.f32.mrb[0].mxu0
  %v606 = vadd.f32 %v521, %v605
  %v607 = vpop.f32.mrb[0].mxu0
  %v608 = vpop.f32.mrb[0].mxu0
  %v609 = vadd.f32 %v521, %v608
  %v610 = vpop.f32.mrb[0].mxu0
  %611 = vmatprep.mubr.bf16.mxu0 0
  %612 = vmatmul.mubr.bf16.gmra.mrb[0].mxu0 %v477
  %v613 = vpop.f32.mrb[0].mxu0
  %v614 = vadd.f32 %v521, %v613
  %v615 = vpop.f32.mrb[0].mxu0
  %v616 = vpop.f32.mrb[0].mxu0
  %v617 = vadd.f32 %v521, %v616
  %v618 = vpop.f32.mrb[0].mxu0
  %619 = vmatprep.mubr.bf16.mxu0 0
  %620 = vmatmul.mubr.bf16.gmra.mrb[0].mxu0 %v478
  %v621 = vpop.f32.mrb[0].mxu0
  %v622 = vadd.f32 %v521, %v621
  %v623 = vpop.f32.mrb[0].mxu0
  %v624 = vpop.f32.mrb[0].mxu0
  %v625 = vadd.f32 %v521, %v624
  %v626 = vpop.f32.mrb[0].mxu0
  %627 = vmatprep.mubr.bf16.mxu0 0
  %628 = vmatmul.mubr.bf16.gmra.mrb[0].mxu0 %v479
  %v629 = vpop.f32.mrb[0].mxu0
  %v630 = vadd.f32 %v521, %v629
  %v631 = vpop.f32.mrb[0].mxu0
  %v632 = vpop.f32.mrb[0].mxu0
  %v633 = vadd.f32 %v521, %v632
  %v634 = vpop.f32.mrb[0].mxu0
  %635 = vmatprep.mubr.bf16.mxu0 0
  %636 = vmatmul.mubr.bf16.gmra.mrb[0].mxu0 %v480
  %v637 = vpop.f32.mrb[0].mxu0
  %v638 = vadd.f32 %v521, %v637
  %v639 = vpop.f32.mrb[0].mxu0
  %v640 = vpop.f32.mrb[0].mxu0
  %v641 = vadd.f32 %v521, %v640
  %v642 = vpop.f32.mrb[0].mxu0
  %643 = vmatprep.mubr.bf16.mxu0 0
  %644 = vmatmul.mubr.bf16.gmra.mrb[0].mxu0 %v481
  %v645 = vpop.f32.mrb[0].mxu0
  %v646 = vadd.f32 %v521, %v645
  %v647 = vpop.f32.mrb[0].mxu0
  %v648 = vpop.f32.mrb[0].mxu0
  %v649 = vadd.f32 %v521, %v648
  %v650 = vpop.f32.mrb[0].mxu0
  %651 = vmatprep.mubr.bf16.mxu0 0
  %652 = vmatmul.mubr.bf16.gmra.mrb[0].mxu0 %v482
  %v653 = vpop.f32.mrb[0].mxu0
  %v654 = vadd.f32 %v521, %v653
  %v655 = vpop.f32.mrb[0].mxu0
  %v656 = vpop.f32.mrb[0].mxu0
  %v657 = vadd.f32 %v521, %v656
  %v658 = vpop.f32.mrb[0].mxu0
  %659 = vmatprep.mubr.bf16.mxu0 0
  %660 = vmatmul.mubr.bf16.gmra.mrb[0].mxu0 %v483
  %v661 = vpop.f32.mrb[0].mxu0
  %v662 = vadd.f32 %v521, %v661
  %v663 = vpop.f32.mrb[0].mxu0
  %v664 = vpop.f32.mrb[0].mxu0
  %v665 = vadd.f32 %v521, %v664
  %v666 = vpop.f32.mrb[0].mxu0
  %667 = vmatprep.mubr.bf16.mxu0 0
  %668 = vmatmul.mubr.bf16.gmra.mrb[0].mxu0 %v484
  %v669 = vpop.f32.mrb[0].mxu0
  %v670 = vadd.f32 %v521, %v669
  %v671 = vpop.f32.mrb[0].mxu0
  %v672 = vpop.f32.mrb[0].mxu0
  %v673 = vadd.f32 %v521, %v672
  %v674 = vpop.f32.mrb[0].mxu0
  %675 = vmatprep.mubr.bf16.mxu0 0
  %676 = vmatmul.mubr.bf16.gmra.mrb[0].mxu0 %v485
  %v677 = vpop.f32.mrb[0].mxu0
  %v678 = vadd.f32 %v521, %v677
  %v679 = vpop.f32.mrb[0].mxu0
  %v680 = vpop.f32.mrb[0].mxu0
  %v681 = vadd.f32 %v521, %v680
  %v682 = vpop.f32.mrb[0].mxu0
  %683 = vmatprep.mubr.bf16.mxu0 0
  %684 = vmatmul.mubr.bf16.gmra.mrb[0].mxu0 %v486
  %v685 = vpop.f32.mrb[0].mxu0
  %v686 = vadd.f32 %v521, %v685
  %v687 = vpop.f32.mrb[0].mxu0
  %v688 = vpop.f32.mrb[0].mxu0
  %v689 = vadd.f32 %v521, %v688
  %v690 = vpop.f32.mrb[0].mxu0
  %691 = vmatprep.mubr.bf16.mxu0 0
  %692 = vmatmul.mubr.bf16.gmra.mrb[0].mxu0 %v487
  %v693 = vpop.f32.mrb[0].mxu0
  %v694 = vadd.f32 %v521, %v693
  %v695 = vpop.f32.mrb[0].mxu0
  %v696 = vpop.f32.mrb[0].mxu0
  %v697 = vadd.f32 %v521, %v696
  %v698 = vpop.f32.mrb[0].mxu0
  %699 = vmatprep.mubr.bf16.mxu0 0
  %700 = vmatmul.mubr.bf16.gmra.mrb[0].mxu0 %v488
  %v701 = vpop.f32.mrb[0].mxu0
  %v702 = vadd.f32 %v521, %v701
  %v703 = vpop.f32.mrb[0].mxu0
  %v704 = vpop.f32.mrb[0].mxu0
  %v705 = vadd.f32 %v521, %v704
  %v706 = vpop.f32.mrb[0].mxu0
  %707 = vmatprep.mubr.bf16.mxu0 0
  %708 = vmatmul.mubr.bf16.gmra.mrb[0].mxu0 %v489
  %v709 = vpop.f32.mrb[0].mxu0
  %v710 = vadd.f32 %v521, %v709
  %v711 = vpop.f32.mrb[0].mxu0
  %v712 = vpop.f32.mrb[0].mxu0
  %v713 = vadd.f32 %v521, %v712
  %v714 = vpop.f32.mrb[0].mxu0
  %715 = vmatprep.mubr.bf16.mxu0 0
  %716 = vmatmul.mubr.bf16.gmra.mrb[0].mxu0 %v490
  %v717 = vpop.f32.mrb[0].mxu0
  %v718 = vadd.f32 %v521, %v717
  %v719 = vpop.f32.mrb[0].mxu0
  %v720 = vpop.f32.mrb[0].mxu0
  %v721 = vadd.f32 %v521, %v720
  %v722 = vpop.f32.mrb[0].mxu0
  %723 = vmatprep.mubr.bf16.mxu0 0
  %724 = vmatmul.mubr.bf16.gmra.mrb[0].mxu0 %v491
  %v725 = vpop.f32.mrb[0].mxu0
  %v726 = vadd.f32 %v521, %v725
  %v727 = vpop.f32.mrb[0].mxu0
  %v728 = vpop.f32.mrb[0].mxu0
  %v729 = vadd.f32 %v521, %v728
  %v730 = vpop.f32.mrb[0].mxu0
  %731 = vmatprep.mubr.bf16.mxu0 0
  %732 = vmatmul.mubr.bf16.gmra.mrb[0].mxu0 %v492
  %v733 = vpop.f32.mrb[0].mxu0
  %v734 = vadd.f32 %v521, %v733
  %v735 = vpop.f32.mrb[0].mxu0
  %v736 = vpop.f32.mrb[0].mxu0
  %v737 = vadd.f32 %v521, %v736
  %v738 = vpop.f32.mrb[0].mxu0
  %739 = vmatprep.mubr.bf16.mxu0 0
  %740 = vmatmul.mubr.bf16.gmra.mrb[0].mxu0 %v493
  %v741 = vpop.f32.mrb[0].mxu0
  %v742 = vadd.f32 %v521, %v741
  %v743 = vpop.f32.mrb[0].mxu0
  %v744 = vpop.f32.mrb[0].mxu0
  %v745 = vadd.f32 %v521, %v744
  %v746 = vpop.f32.mrb[0].mxu0
  %747 = vmatprep.mubr.bf16.mxu0 0
  %748 = vmatmul.mubr.bf16.gmra.mrb[0].mxu0 %v494
  %v749 = vpop.f32.mrb[0].mxu0
  %v750 = vadd.f32 %v521, %v749
  %v751 = vpop.f32.mrb[0].mxu0
  %v752 = vpop.f32.mrb[0].mxu0
  %v753 = vadd.f32 %v521, %v752
  %v754 = vpop.f32.mrb[0].mxu0
  %755 = vmatprep.mubr.bf16.mxu0 0
  %756 = vmatmul.mubr.bf16.gmra.mrb[0].mxu0 %v495
  %v757 = vpop.f32.mrb[0].mxu0
  %v758 = vadd.f32 %v521, %v757
  %v759 = vpop.f32.mrb[0].mxu0
  %v760 = vpop.f32.mrb[0].mxu0
  %v761 = vadd.f32 %v521, %v760
  %v762 = vpop.f32.mrb[0].mxu0
  %763 = vmatprep.mubr.bf16.mxu0 0
  %764 = vmatmul.mubr.bf16.gmra.mrb[0].mxu0 %v496
  %v765 = vpop.f32.mrb[0].mxu0
  %v766 = vadd.f32 %v521, %v765
  %v767 = vpop.f32.mrb[0].mxu0
  %v768 = vpop.f32.mrb[0].mxu0
  %v769 = vadd.f32 %v521, %v768
  %v770 = vpop.f32.mrb[0].mxu0
  %771 = vmatprep.mubr.bf16.mxu0 0
  %772 = vmatmul.mubr.bf16.gmra.mrb[0].mxu0 %v497
  %v773 = vpop.f32.mrb[0].mxu0
  %v774 = vadd.f32 %v521, %v773
  %v775 = vpop.f32.mrb[0].mxu0
  %v776 = vpop.f32.mrb[0].mxu0
  %v777 = vadd.f32 %v521, %v776
  %v778 = vpop.f32.mrb[0].mxu0
  %779 = vmatprep.mubr.bf16.mxu0 0
  %780 = vmatmul.mubr.bf16.gmra.mrb[0].mxu0 %v498
  %v781 = vpop.f32.mrb[0].mxu0
  %v782 = vadd.f32 %v521, %v781
  %v783 = vpop.f32.mrb[0].mxu0
  %v784 = vpop.f32.mrb[0].mxu0
  %v785 = vadd.f32 %v521, %v784
  %v786 = vpop.f32.mrb[0].mxu0
  %787 = vmatprep.mubr.bf16.mxu0 0
  %788 = vmatmul.mubr.bf16.gmra.mrb[0].mxu0 %v499
  %v789 = vpop.f32.mrb[0].mxu0
  %v790 = vadd.f32 %v521, %v789
  %v791 = vpop.f32.mrb[0].mxu0
  %v792 = vpop.f32.mrb[0].mxu0
  %v793 = vadd.f32 %v521, %v792
  %v794 = vpop.f32.mrb[0].mxu0
  %795 = vdwg.mxu0
  %v796 = vmax.f32 %v606, 0.0
  %v797 = vmax.f32 %v609, 0.0
  %v798 = vmax.f32 %v614, 0.0
  %v799 = vmax.f32 %v617, 0.0
  %v800 = vmax.f32 %v622, 0.0
  %v801 = vmax.f32 %v625, 0.0
  %v802 = vmax.f32 %v630, 0.0
  %v803 = vmax.f32 %v633, 0.0
  %v804 = vmax.f32 %v638, 0.0
  %v805 = vmax.f32 %v641, 0.0
  %v806 = vmax.f32 %v646, 0.0
  %v807 = vmax.f32 %v649, 0.0
  %v808 = vmax.f32 %v654, 0.0
  %v809 = vmax.f32 %v657, 0.0
  %v810 = vmax.f32 %v662, 0.0
  %v811 = vmax.f32 %v665, 0.0
  %v812 = vmax.f32 %v670, 0.0
  %v813 = vmax.f32 %v673, 0.0
  %v814 = vmax.f32 %v678, 0.0
  %v815 = vmax.f32 %v681, 0.0
  %v816 = vmax.f32 %v686, 0.0
  %v817 = vmax.f32 %v689, 0.0
  %v818 = vmax.f32 %v694, 0.0
  %v819 = vmax.f32 %v697, 0.0
  %v820 = vmax.f32 %v702, 0.0
  %v821 = vmax.f32 %v705, 0.0
  %v822 = vmax.f32 %v710, 0.0
  %v823 = vmax.f32 %v713, 0.0
  %v824 = vmax.f32 %v718, 0.0
  %v825 = vmax.f32 %v721, 0.0
  %v826 = vmax.f32 %v726, 0.0
  %v827 = vmax.f32 %v729, 0.0
  %v828 = vmax.f32 %v734, 0.0
  %v829 = vmax.f32 %v737, 0.0
  %v830 = vmax.f32 %v742, 0.0
  %v831 = vmax.f32 %v745, 0.0
  %v832 = vmax.f32 %v750, 0.0
  %v833 = vmax.f32 %v753, 0.0
  %v834 = vmax.f32 %v758, 0.0
  %v835 = vmax.f32 %v761, 0.0
  %v836 = vmax.f32 %v766, 0.0
  %v837 = vmax.f32 %v769, 0.0
  %v838 = vmax.f32 %v774, 0.0
  %v839 = vmax.f32 %v777, 0.0
  %v840 = vmax.f32 %v782, 0.0
  %v841 = vmax.f32 %v785, 0.0
  %v842 = vmax.f32 %v790, 0.0
  %v843 = vmax.f32 %v793, 0.0
  %v844 = vpack.c.bf16 %v797, %v796
  %v845 = vpack.c.bf16 %v799, %v798
  %v846 = vpack.c.bf16 %v801, %v800
  %v847 = vpack.c.bf16 %v803, %v802
  %v848 = vpack.c.bf16 %v805, %v804
  %v849 = vpack.c.bf16 %v807, %v806
  %v850 = vpack.c.bf16 %v809, %v808
  %v851 = vpack.c.bf16 %v811, %v810
  %v852 = vpack.c.bf16 %v813, %v812
  %v853 = vpack.c.bf16 %v815, %v814
  %v854 = vpack.c.bf16 %v817, %v816
  %v855 = vpack.c.bf16 %v819, %v818
  %v856 = vpack.c.bf16 %v821, %v820
  %v857 = vpack.c.bf16 %v823, %v822
  %v858 = vpack.c.bf16 %v825, %v824
  %v859 = vpack.c.bf16 %v827, %v826
  %v860 = vpack.c.bf16 %v829, %v828
  %v861 = vpack.c.bf16 %v831, %v830
  %v862 = vpack.c.bf16 %v833, %v832
  %v863 = vpack.c.bf16 %v835, %v834
  %v864 = vpack.c.bf16 %v837, %v836
  %v865 = vpack.c.bf16 %v839, %v838
  %v866 = vpack.c.bf16 %v841, %v840
  %v867 = vpack.c.bf16 %v843, %v842
  %v868 = vld [vmem:[%s5] sm:$0xf]
  %v869 = vld [vmem:[%s5 + $0x4] sm:$0xf]
  %v870 = vld [vmem:[%s5 + $0x8] sm:$0xf]
  %v871 = vld [vmem:[%s5 + $0xc] sm:$0xf]
  %v872 = vld [vmem:[%s5 + $0x10] sm:$0xf]
  %v873 = vld [vmem:[%s5 + $0x14] sm:$0xf]
  %v874 = vld [vmem:[%s5 + $0x18] sm:$0xf]
  %v875 = vld [vmem:[%s5 + $0x1c] sm:$0xf]
  %v876 = vld [vmem:[%s6] sm:$0x1]
  %v878 = vlaneseq
  %v879 = vshrl.u32 %v878, 7
  %v880 = vsub.s32 0, %v879
  %v881 = vrot.slane %v876, %v880
  %v891 = vunpack.c.l.b16 %v868
  %v892 = vunpack.c.l.b16 %v869
  %v893 = vunpack.c.l.b16 %v870
  %v894 = vunpack.c.l.b16 %v871
  %v895 = vunpack.c.l.b16 %v872
  %v896 = vunpack.c.l.b16 %v873
  %v897 = vunpack.c.l.b16 %v874
  %v898 = vunpack.c.l.b16 %v875
  %v899 = vpack.c.b16 %v892, %v891
  %v900 = vpack.c.b16 %v894, %v893
  %v901 = vpack.c.b16 %v896, %v895
  %v902 = vpack.c.b16 %v898, %v897
  %vm907 = vcmask 523264
  %v909 = vsel %vm907, %v844, 0
  %v912 = vsel %vm907, %v845, 0
  %v915 = vsel %vm907, %v846, 0
  %v918 = vsel %vm907, %v847, 0
  %v921 = vsel %vm907, %v848, 0
  %v924 = vsel %vm907, %v849, 0
  %v927 = vsel %vm907, %v850, 0
  %v930 = vsel %vm907, %v851, 0
  %v933 = vsel %vm907, %v852, 0
  %v936 = vsel %vm907, %v853, 0
  %v939 = vsel %vm907, %v854, 0
  %v942 = vsel %vm907, %v855, 0
  %v945 = vsel %vm907, %v856, 0
  %v948 = vsel %vm907, %v857, 0
  %v951 = vsel %vm907, %v858, 0
  %v954 = vsel %vm907, %v859, 0
  %v957 = vsel %vm907, %v860, 0
  %v960 = vsel %vm907, %v861, 0
  %v963 = vsel %vm907, %v862, 0
  %v966 = vsel %vm907, %v863, 0
  %v969 = vsel %vm907, %v864, 0
  %v972 = vsel %vm907, %v865, 0
  %v975 = vsel %vm907, %v866, 0
  %v978 = vsel %vm907, %v867, 0
  %980 = vmatprep.subr.bf16.mxu0 0
  %981 = vmatpush1.bf16.msra.mxu0 %v899
  %982 = vmatprep.subr.bf16.mxu0 0
  %983 = vmatpush1.bf16.msra.mxu0 %v900
  %984 = vmatprep.subr.bf16.mxu0 0
  %985 = vmatpush1.bf16.msra.mxu0 %v901
  %986 = vmatprep.subr.bf16.mxu0 0
  %987 = vmatpush1.bf16.msra.mxu0 %v902
  %988 = vmatprep.subr.bf16.mxu0 0
  %989 = vmatpush1.bf16.msra.mxu0 0
  %990 = vmatprep.subr.bf16.mxu0 0
  %991 = vmatpush1.bf16.msra.mxu0 0
  %992 = vmatprep.subr.bf16.mxu0 0
  %993 = vmatpush1.bf16.msra.mxu0 0
  %994 = vmatprep.subr.bf16.mxu0 0
  %995 = vmatpush1.bf16.msra.mxu0 0
  %996 = vmatprep.subr.bf16.mxu0 0
  %997 = vmatpush1.bf16.msra.mxu0 0
  %998 = vmatprep.subr.bf16.mxu0 0
  %999 = vmatpush1.bf16.msra.mxu0 0
  %1000 = vmatprep.subr.bf16.mxu0 0
  %1001 = vmatpush1.bf16.msra.mxu0 0
  %1002 = vmatprep.subr.bf16.mxu0 0
  %1003 = vmatpush1.bf16.msra.mxu0 0
  %1004 = vmatprep.subr.bf16.mxu0 0
  %1005 = vmatpush1.bf16.msra.mxu0 0
  %1006 = vmatprep.subr.bf16.mxu0 0
  %1007 = vmatpush1.bf16.msra.mxu0 0
  %1008 = vmatprep.subr.bf16.mxu0 0
  %1009 = vmatpush1.bf16.msra.mxu0 0
  %1010 = vmatprep.subr.bf16.mxu0 0
  %1011 = vmatpush1.bf16.msra.mxu0 0
  %1012 = vmatprep.mubr.bf16.mxu0 0
  %1013 = vmatmul.mubr.bf16.gmra.mrb[0].mxu0 %v909
  %v1014 = vpop.f32.mrb[0].mxu0
  %v1015 = vadd.f32 %v881, %v1014
  %v1016 = vpop.f32.mrb[0].mxu0
  %v1017 = vpop.f32.mrb[0].mxu0
  %v1018 = vadd.f32 %v881, %v1017
  %v1019 = vpop.f32.mrb[0].mxu0
  %1020 = vmatprep.mubr.bf16.mxu0 0
  %1021 = vmatmul.mubr.bf16.gmra.mrb[0].mxu0 %v912
  %v1022 = vpop.f32.mrb[0].mxu0
  %v1023 = vadd.f32 %v881, %v1022
  %v1024 = vpop.f32.mrb[0].mxu0
  %v1025 = vpop.f32.mrb[0].mxu0
  %v1026 = vadd.f32 %v881, %v1025
  %v1027 = vpop.f32.mrb[0].mxu0
  %1028 = vmatprep.mubr.bf16.mxu0 0
  %1029 = vmatmul.mubr.bf16.gmra.mrb[0].mxu0 %v915
  %v1030 = vpop.f32.mrb[0].mxu0
  %v1031 = vadd.f32 %v881, %v1030
  %v1032 = vpop.f32.mrb[0].mxu0
  %v1033 = vpop.f32.mrb[0].mxu0
  %v1034 = vadd.f32 %v881, %v1033
  %v1035 = vpop.f32.mrb[0].mxu0
  %1036 = vmatprep.mubr.bf16.mxu0 0
  %1037 = vmatmul.mubr.bf16.gmra.mrb[0].mxu0 %v918
  %v1038 = vpop.f32.mrb[0].mxu0
  %v1039 = vadd.f32 %v881, %v1038
  %v1040 = vpop.f32.mrb[0].mxu0
  %v1041 = vpop.f32.mrb[0].mxu0
  %v1042 = vadd.f32 %v881, %v1041
  %v1043 = vpop.f32.mrb[0].mxu0
  %1044 = vmatprep.mubr.bf16.mxu0 0
  %1045 = vmatmul.mubr.bf16.gmra.mrb[0].mxu0 %v921
  %v1046 = vpop.f32.mrb[0].mxu0
  %v1047 = vadd.f32 %v881, %v1046
  %v1048 = vpop.f32.mrb[0].mxu0
  %v1049 = vpop.f32.mrb[0].mxu0
  %v1050 = vadd.f32 %v881, %v1049
  %v1051 = vpop.f32.mrb[0].mxu0
  %1052 = vmatprep.mubr.bf16.mxu0 0
  %1053 = vmatmul.mubr.bf16.gmra.mrb[0].mxu0 %v924
  %v1054 = vpop.f32.mrb[0].mxu0
  %v1055 = vadd.f32 %v881, %v1054
  %v1056 = vpop.f32.mrb[0].mxu0
  %v1057 = vpop.f32.mrb[0].mxu0
  %v1058 = vadd.f32 %v881, %v1057
  %v1059 = vpop.f32.mrb[0].mxu0
  %1060 = vmatprep.mubr.bf16.mxu0 0
  %1061 = vmatmul.mubr.bf16.gmra.mrb[0].mxu0 %v927
  %v1062 = vpop.f32.mrb[0].mxu0
  %v1063 = vadd.f32 %v881, %v1062
  %v1064 = vpop.f32.mrb[0].mxu0
  %v1065 = vpop.f32.mrb[0].mxu0
  %v1066 = vadd.f32 %v881, %v1065
  %v1067 = vpop.f32.mrb[0].mxu0
  %1068 = vmatprep.mubr.bf16.mxu0 0
  %1069 = vmatmul.mubr.bf16.gmra.mrb[0].mxu0 %v930
  %v1070 = vpop.f32.mrb[0].mxu0
  %v1071 = vadd.f32 %v881, %v1070
  %v1072 = vpop.f32.mrb[0].mxu0
  %v1073 = vpop.f32.mrb[0].mxu0
  %v1074 = vadd.f32 %v881, %v1073
  %v1075 = vpop.f32.mrb[0].mxu0
  %1076 = vmatprep.mubr.bf16.mxu0 0
  %1077 = vmatmul.mubr.bf16.gmra.mrb[0].mxu0 %v933
  %v1078 = vpop.f32.mrb[0].mxu0
  %v1079 = vadd.f32 %v881, %v1078
  %v1080 = vpop.f32.mrb[0].mxu0
  %v1081 = vpop.f32.mrb[0].mxu0
  %v1082 = vadd.f32 %v881, %v1081
  %v1083 = vpop.f32.mrb[0].mxu0
  %1084 = vmatprep.mubr.bf16.mxu0 0
  %1085 = vmatmul.mubr.bf16.gmra.mrb[0].mxu0 %v936
  %v1086 = vpop.f32.mrb[0].mxu0
  %v1087 = vadd.f32 %v881, %v1086
  %v1088 = vpop.f32.mrb[0].mxu0
  %v1089 = vpop.f32.mrb[0].mxu0
  %v1090 = vadd.f32 %v881, %v1089
  %v1091 = vpop.f32.mrb[0].mxu0
  %1092 = vmatprep.mubr.bf16.mxu0 0
  %1093 = vmatmul.mubr.bf16.gmra.mrb[0].mxu0 %v939
  %v1094 = vpop.f32.mrb[0].mxu0
  %v1095 = vadd.f32 %v881, %v1094
  %v1096 = vpop.f32.mrb[0].mxu0
  %v1097 = vpop.f32.mrb[0].mxu0
  %v1098 = vadd.f32 %v881, %v1097
  %v1099 = vpop.f32.mrb[0].mxu0
  %1100 = vmatprep.mubr.bf16.mxu0 0
  %1101 = vmatmul.mubr.bf16.gmra.mrb[0].mxu0 %v942
  %v1102 = vpop.f32.mrb[0].mxu0
  %v1103 = vadd.f32 %v881, %v1102
  %v1104 = vpop.f32.mrb[0].mxu0
  %v1105 = vpop.f32.mrb[0].mxu0
  %v1106 = vadd.f32 %v881, %v1105
  %v1107 = vpop.f32.mrb[0].mxu0
  %1108 = vmatprep.mubr.bf16.mxu0 0
  %1109 = vmatmul.mubr.bf16.gmra.mrb[0].mxu0 %v945
  %v1110 = vpop.f32.mrb[0].mxu0
  %v1111 = vadd.f32 %v881, %v1110
  %v1112 = vpop.f32.mrb[0].mxu0
  %v1113 = vpop.f32.mrb[0].mxu0
  %v1114 = vadd.f32 %v881, %v1113
  %v1115 = vpop.f32.mrb[0].mxu0
  %1116 = vmatprep.mubr.bf16.mxu0 0
  %1117 = vmatmul.mubr.bf16.gmra.mrb[0].mxu0 %v948
  %v1118 = vpop.f32.mrb[0].mxu0
  %v1119 = vadd.f32 %v881, %v1118
  %v1120 = vpop.f32.mrb[0].mxu0
  %v1121 = vpop.f32.mrb[0].mxu0
  %v1122 = vadd.f32 %v881, %v1121
  %v1123 = vpop.f32.mrb[0].mxu0
  %1124 = vmatprep.mubr.bf16.mxu0 0
  %1125 = vmatmul.mubr.bf16.gmra.mrb[0].mxu0 %v951
  %v1126 = vpop.f32.mrb[0].mxu0
  %v1127 = vadd.f32 %v881, %v1126
  %v1128 = vpop.f32.mrb[0].mxu0
  %v1129 = vpop.f32.mrb[0].mxu0
  %v1130 = vadd.f32 %v881, %v1129
  %v1131 = vpop.f32.mrb[0].mxu0
  %1132 = vmatprep.mubr.bf16.mxu0 0
  %1133 = vmatmul.mubr.bf16.gmra.mrb[0].mxu0 %v954
  %v1134 = vpop.f32.mrb[0].mxu0
  %v1135 = vadd.f32 %v881, %v1134
  %v1136 = vpop.f32.mrb[0].mxu0
  %v1137 = vpop.f32.mrb[0].mxu0
  %v1138 = vadd.f32 %v881, %v1137
  %v1139 = vpop.f32.mrb[0].mxu0
  %1140 = vmatprep.mubr.bf16.mxu0 0
  %1141 = vmatmul.mubr.bf16.gmra.mrb[0].mxu0 %v957
  %v1142 = vpop.f32.mrb[0].mxu0
  %v1143 = vadd.f32 %v881, %v1142
  %v1144 = vpop.f32.mrb[0].mxu0
  %v1145 = vpop.f32.mrb[0].mxu0
  %v1146 = vadd.f32 %v881, %v1145
  %v1147 = vpop.f32.mrb[0].mxu0
  %1148 = vmatprep.mubr.bf16.mxu0 0
  %1149 = vmatmul.mubr.bf16.gmra.mrb[0].mxu0 %v960
  %v1150 = vpop.f32.mrb[0].mxu0
  %v1151 = vadd.f32 %v881, %v1150
  %v1152 = vpop.f32.mrb[0].mxu0
  %v1153 = vpop.f32.mrb[0].mxu0
  %v1154 = vadd.f32 %v881, %v1153
  %v1155 = vpop.f32.mrb[0].mxu0
  %1156 = vmatprep.mubr.bf16.mxu0 0
  %1157 = vmatmul.mubr.bf16.gmra.mrb[0].mxu0 %v963
  %v1158 = vpop.f32.mrb[0].mxu0
  %v1159 = vadd.f32 %v881, %v1158
  %v1160 = vpop.f32.mrb[0].mxu0
  %v1161 = vpop.f32.mrb[0].mxu0
  %v1162 = vadd.f32 %v881, %v1161
  %v1163 = vpop.f32.mrb[0].mxu0
  %1164 = vmatprep.mubr.bf16.mxu0 0
  %1165 = vmatmul.mubr.bf16.gmra.mrb[0].mxu0 %v966
  %v1166 = vpop.f32.mrb[0].mxu0
  %v1167 = vadd.f32 %v881, %v1166
  %v1168 = vpop.f32.mrb[0].mxu0
  %v1169 = vpop.f32.mrb[0].mxu0
  %v1170 = vadd.f32 %v881, %v1169
  %v1171 = vpop.f32.mrb[0].mxu0
  %1172 = vmatprep.mubr.bf16.mxu0 0
  %1173 = vmatmul.mubr.bf16.gmra.mrb[0].mxu0 %v969
  %v1174 = vpop.f32.mrb[0].mxu0
  %v1175 = vadd.f32 %v881, %v1174
  %v1176 = vpop.f32.mrb[0].mxu0
  %v1177 = vpop.f32.mrb[0].mxu0
  %v1178 = vadd.f32 %v881, %v1177
  %v1179 = vpop.f32.mrb[0].mxu0
  %1180 = vmatprep.mubr.bf16.mxu0 0
  %1181 = vmatmul.mubr.bf16.gmra.mrb[0].mxu0 %v972
  %v1182 = vpop.f32.mrb[0].mxu0
  %v1183 = vadd.f32 %v881, %v1182
  %v1184 = vpop.f32.mrb[0].mxu0
  %v1185 = vpop.f32.mrb[0].mxu0
  %v1186 = vadd.f32 %v881, %v1185
  %v1187 = vpop.f32.mrb[0].mxu0
  %1188 = vmatprep.mubr.bf16.mxu0 0
  %1189 = vmatmul.mubr.bf16.gmra.mrb[0].mxu0 %v975
  %v1190 = vpop.f32.mrb[0].mxu0
  %v1191 = vadd.f32 %v881, %v1190
  %v1192 = vpop.f32.mrb[0].mxu0
  %v1193 = vpop.f32.mrb[0].mxu0
  %v1194 = vadd.f32 %v881, %v1193
  %v1195 = vpop.f32.mrb[0].mxu0
  %1196 = vmatprep.mubr.bf16.mxu0 0
  %1197 = vmatmul.mubr.bf16.gmra.mrb[0].mxu0 %v978
  %v1198 = vpop.f32.mrb[0].mxu0
  %v1199 = vadd.f32 %v881, %v1198
  %v1200 = vpop.f32.mrb[0].mxu0
  %v1201 = vpop.f32.mrb[0].mxu0
  %v1202 = vadd.f32 %v881, %v1201
  %v1203 = vpop.f32.mrb[0].mxu0
  %1204 = vdwg.mxu0
  %v1205 = vmax.f32 %v1015, 0.0
  %v1206 = vmax.f32 %v1018, 0.0
  %v1207 = vmax.f32 %v1023, 0.0
  %v1208 = vmax.f32 %v1026, 0.0
  %v1209 = vmax.f32 %v1031, 0.0
  %v1210 = vmax.f32 %v1034, 0.0
  %v1211 = vmax.f32 %v1039, 0.0
  %v1212 = vmax.f32 %v1042, 0.0
  %v1213 = vmax.f32 %v1047, 0.0
  %v1214 = vmax.f32 %v1050, 0.0
  %v1215 = vmax.f32 %v1055, 0.0
  %v1216 = vmax.f32 %v1058, 0.0
  %v1217 = vmax.f32 %v1063, 0.0
  %v1218 = vmax.f32 %v1066, 0.0
  %v1219 = vmax.f32 %v1071, 0.0
  %v1220 = vmax.f32 %v1074, 0.0
  %v1221 = vmax.f32 %v1079, 0.0
  %v1222 = vmax.f32 %v1082, 0.0
  %v1223 = vmax.f32 %v1087, 0.0
  %v1224 = vmax.f32 %v1090, 0.0
  %v1225 = vmax.f32 %v1095, 0.0
  %v1226 = vmax.f32 %v1098, 0.0
  %v1227 = vmax.f32 %v1103, 0.0
  %v1228 = vmax.f32 %v1106, 0.0
  %v1229 = vmax.f32 %v1111, 0.0
  %v1230 = vmax.f32 %v1114, 0.0
  %v1231 = vmax.f32 %v1119, 0.0
  %v1232 = vmax.f32 %v1122, 0.0
  %v1233 = vmax.f32 %v1127, 0.0
  %v1234 = vmax.f32 %v1130, 0.0
  %v1235 = vmax.f32 %v1135, 0.0
  %v1236 = vmax.f32 %v1138, 0.0
  %v1237 = vmax.f32 %v1143, 0.0
  %v1238 = vmax.f32 %v1146, 0.0
  %v1239 = vmax.f32 %v1151, 0.0
  %v1240 = vmax.f32 %v1154, 0.0
  %v1241 = vmax.f32 %v1159, 0.0
  %v1242 = vmax.f32 %v1162, 0.0
  %v1243 = vmax.f32 %v1167, 0.0
  %v1244 = vmax.f32 %v1170, 0.0
  %v1245 = vmax.f32 %v1175, 0.0
  %v1246 = vmax.f32 %v1178, 0.0
  %v1247 = vmax.f32 %v1183, 0.0
  %v1248 = vmax.f32 %v1186, 0.0
  %v1249 = vmax.f32 %v1191, 0.0
  %v1250 = vmax.f32 %v1194, 0.0
  %v1251 = vmax.f32 %v1199, 0.0
  %v1252 = vmax.f32 %v1202, 0.0
  %v1253 = vpack.c.bf16 %v1206, %v1205
  %v1254 = vpack.c.bf16 %v1208, %v1207
  %v1255 = vpack.c.bf16 %v1210, %v1209
  %v1256 = vpack.c.bf16 %v1212, %v1211
  %v1257 = vpack.c.bf16 %v1214, %v1213
  %v1258 = vpack.c.bf16 %v1216, %v1215
  %v1259 = vpack.c.bf16 %v1218, %v1217
  %v1260 = vpack.c.bf16 %v1220, %v1219
  %v1261 = vpack.c.bf16 %v1222, %v1221
  %v1262 = vpack.c.bf16 %v1224, %v1223
  %v1263 = vpack.c.bf16 %v1226, %v1225
  %v1264 = vpack.c.bf16 %v1228, %v1227
  %v1265 = vpack.c.bf16 %v1230, %v1229
  %v1266 = vpack.c.bf16 %v1232, %v1231
  %v1267 = vpack.c.bf16 %v1234, %v1233
  %v1268 = vpack.c.bf16 %v1236, %v1235
  %v1269 = vpack.c.bf16 %v1238, %v1237
  %v1270 = vpack.c.bf16 %v1240, %v1239
  %v1271 = vpack.c.bf16 %v1242, %v1241
  %v1272 = vpack.c.bf16 %v1244, %v1243
  %v1273 = vpack.c.bf16 %v1246, %v1245
  %v1274 = vpack.c.bf16 %v1248, %v1247
  %v1275 = vpack.c.bf16 %v1250, %v1249
  %v1276 = vpack.c.bf16 %v1252, %v1251
  %v1277 = vld [vmem:[%s7] sm:$0xf]
  %v1278 = vld [vmem:[%s7 + $0x4] sm:$0xf]
  %v1279 = vld [vmem:[%s7 + $0x8] sm:$0xf]
  %v1280 = vld [vmem:[%s7 + $0xc] sm:$0xf]
  %v1281 = vld [vmem:[#allocation2] sm:$0x1]
  %v1283 = vlaneseq
  %v1284 = vshrl.u32 %v1283, 7
  %v1285 = vsub.s32 0, %v1284
  %v1286 = vrot.slane %v1281, %v1285
  %v1292 = vunpack.c.l.b16 %v1277
  %v1293 = vunpack.c.l.b16 %v1278
  %v1294 = vunpack.c.l.b16 %v1279
  %v1295 = vunpack.c.l.b16 %v1280
  %v1296 = vpack.c.b16 %v1293, %v1292
  %v1297 = vpack.c.b16 %v1295, %v1294
  %v1301 = vsel %vm130, %v1253, 0
  %v1304 = vsel %vm130, %v1254, 0
  %v1307 = vsel %vm130, %v1255, 0
  %v1310 = vsel %vm130, %v1256, 0
  %v1313 = vsel %vm130, %v1257, 0
  %v1316 = vsel %vm130, %v1258, 0
  %v1319 = vsel %vm130, %v1259, 0
  %v1322 = vsel %vm130, %v1260, 0
  %v1325 = vsel %vm130, %v1261, 0
  %v1328 = vsel %vm130, %v1262, 0
  %v1331 = vsel %vm130, %v1263, 0
  %v1334 = vsel %vm130, %v1264, 0
  %v1337 = vsel %vm130, %v1265, 0
  %v1340 = vsel %vm130, %v1266, 0
  %v1343 = vsel %vm130, %v1267, 0
  %v1346 = vsel %vm130, %v1268, 0
  %v1349 = vsel %vm130, %v1269, 0
  %v1352 = vsel %vm130, %v1270, 0
  %v1355 = vsel %vm130, %v1271, 0
  %v1358 = vsel %vm130, %v1272, 0
  %v1361 = vsel %vm130, %v1273, 0
  %v1364 = vsel %vm130, %v1274, 0
  %v1367 = vsel %vm130, %v1275, 0
  %v1370 = vsel %vm130, %v1276, 0
  %1372 = vmatprep.subr.bf16.mxu0 0
  %1373 = vmatpush1.bf16.msra.mxu0 %v1296
  %1374 = vmatprep.subr.bf16.mxu0 0
  %1375 = vmatpush1.bf16.msra.mxu0 %v1297
  %1376 = vmatprep.subr.bf16.mxu0 0
  %1377 = vmatpush1.bf16.msra.mxu0 0
  %1378 = vmatprep.subr.bf16.mxu0 0
  %1379 = vmatpush1.bf16.msra.mxu0 0
  %1380 = vmatprep.subr.bf16.mxu0 0
  %1381 = vmatpush1.bf16.msra.mxu0 0
  %1382 = vmatprep.subr.bf16.mxu0 0
  %1383 = vmatpush1.bf16.msra.mxu0 0
  %1384 = vmatprep.subr.bf16.mxu0 0
  %1385 = vmatpush1.bf16.msra.mxu0 0
  %1386 = vmatprep.subr.bf16.mxu0 0
  %1387 = vmatpush1.bf16.msra.mxu0 0
  %1388 = vmatprep.subr.bf16.mxu0 0
  %1389 = vmatpush1.bf16.msra.mxu0 0
  %1390 = vmatprep.subr.bf16.mxu0 0
  %1391 = vmatpush1.bf16.msra.mxu0 0
  %1392 = vmatprep.subr.bf16.mxu0 0
  %1393 = vmatpush1.bf16.msra.mxu0 0
  %1394 = vmatprep.subr.bf16.mxu0 0
  %1395 = vmatpush1.bf16.msra.mxu0 0
  %1396 = vmatprep.subr.bf16.mxu0 0
  %1397 = vmatpush1.bf16.msra.mxu0 0
  %1398 = vmatprep.subr.bf16.mxu0 0
  %1399 = vmatpush1.bf16.msra.mxu0 0
  %1400 = vmatprep.subr.bf16.mxu0 0
  %1401 = vmatpush1.bf16.msra.mxu0 0
  %1402 = vmatprep.subr.bf16.mxu0 0
  %1403 = vmatpush1.bf16.msra.mxu0 0
  %1404 = vmatprep.mubr.bf16.mxu0 0
  %1405 = vmatmul.mubr.bf16.gmra.mrb[0].mxu0 %v1301
  %v1406 = vpop.f32.mrb[0].mxu0
  %v1407 = vadd.f32 %v1286, %v1406
  %v1408 = vpop.f32.mrb[0].mxu0
  %v1409 = vpop.f32.mrb[0].mxu0
  %v1410 = vadd.f32 %v1286, %v1409
  %v1411 = vpop.f32.mrb[0].mxu0
  %1412 = vmatprep.mubr.bf16.mxu0 0
  %1413 = vmatmul.mubr.bf16.gmra.mrb[0].mxu0 %v1304
  %v1414 = vpop.f32.mrb[0].mxu0
  %v1415 = vadd.f32 %v1286, %v1414
  %v1416 = vpop.f32.mrb[0].mxu0
  %v1417 = vpop.f32.mrb[0].mxu0
  %v1418 = vadd.f32 %v1286, %v1417
  %v1419 = vpop.f32.mrb[0].mxu0
  %1420 = vmatprep.mubr.bf16.mxu0 0
  %1421 = vmatmul.mubr.bf16.gmra.mrb[0].mxu0 %v1307
  %v1422 = vpop.f32.mrb[0].mxu0
  %v1423 = vadd.f32 %v1286, %v1422
  %v1424 = vpop.f32.mrb[0].mxu0
  %v1425 = vpop.f32.mrb[0].mxu0
  %v1426 = vadd.f32 %v1286, %v1425
  %v1427 = vpop.f32.mrb[0].mxu0
  %1428 = vmatprep.mubr.bf16.mxu0 0
  %1429 = vmatmul.mubr.bf16.gmra.mrb[0].mxu0 %v1310
  %v1430 = vpop.f32.mrb[0].mxu0
  %v1431 = vadd.f32 %v1286, %v1430
  %v1432 = vpop.f32.mrb[0].mxu0
  %v1433 = vpop.f32.mrb[0].mxu0
  %v1434 = vadd.f32 %v1286, %v1433
  %v1435 = vpop.f32.mrb[0].mxu0
  %1436 = vmatprep.mubr.bf16.mxu0 0
  %1437 = vmatmul.mubr.bf16.gmra.mrb[0].mxu0 %v1313
  %v1438 = vpop.f32.mrb[0].mxu0
  %v1439 = vadd.f32 %v1286, %v1438
  %v1440 = vpop.f32.mrb[0].mxu0
  %v1441 = vpop.f32.mrb[0].mxu0
  %v1442 = vadd.f32 %v1286, %v1441
  %v1443 = vpop.f32.mrb[0].mxu0
  %1444 = vmatprep.mubr.bf16.mxu0 0
  %1445 = vmatmul.mubr.bf16.gmra.mrb[0].mxu0 %v1316
  %v1446 = vpop.f32.mrb[0].mxu0
  %v1447 = vadd.f32 %v1286, %v1446
  %v1448 = vpop.f32.mrb[0].mxu0
  %v1449 = vpop.f32.mrb[0].mxu0
  %v1450 = vadd.f32 %v1286, %v1449
  %v1451 = vpop.f32.mrb[0].mxu0
  %1452 = vmatprep.mubr.bf16.mxu0 0
  %1453 = vmatmul.mubr.bf16.gmra.mrb[0].mxu0 %v1319
  %v1454 = vpop.f32.mrb[0].mxu0
  %v1455 = vadd.f32 %v1286, %v1454
  %v1456 = vpop.f32.mrb[0].mxu0
  %v1457 = vpop.f32.mrb[0].mxu0
  %v1458 = vadd.f32 %v1286, %v1457
  %v1459 = vpop.f32.mrb[0].mxu0
  %1460 = vmatprep.mubr.bf16.mxu0 0
  %1461 = vmatmul.mubr.bf16.gmra.mrb[0].mxu0 %v1322
  %v1462 = vpop.f32.mrb[0].mxu0
  %v1463 = vadd.f32 %v1286, %v1462
  %v1464 = vpop.f32.mrb[0].mxu0
  %v1465 = vpop.f32.mrb[0].mxu0
  %v1466 = vadd.f32 %v1286, %v1465
  %v1467 = vpop.f32.mrb[0].mxu0
  %1468 = vmatprep.mubr.bf16.mxu0 0
  %1469 = vmatmul.mubr.bf16.gmra.mrb[0].mxu0 %v1325
  %v1470 = vpop.f32.mrb[0].mxu0
  %v1471 = vadd.f32 %v1286, %v1470
  %v1472 = vpop.f32.mrb[0].mxu0
  %v1473 = vpop.f32.mrb[0].mxu0
  %v1474 = vadd.f32 %v1286, %v1473
  %v1475 = vpop.f32.mrb[0].mxu0
  %1476 = vmatprep.mubr.bf16.mxu0 0
  %1477 = vmatmul.mubr.bf16.gmra.mrb[0].mxu0 %v1328
  %v1478 = vpop.f32.mrb[0].mxu0
  %v1479 = vadd.f32 %v1286, %v1478
  %v1480 = vpop.f32.mrb[0].mxu0
  %v1481 = vpop.f32.mrb[0].mxu0
  %v1482 = vadd.f32 %v1286, %v1481
  %v1483 = vpop.f32.mrb[0].mxu0
  %1484 = vmatprep.mubr.bf16.mxu0 0
  %1485 = vmatmul.mubr.bf16.gmra.mrb[0].mxu0 %v1331
  %v1486 = vpop.f32.mrb[0].mxu0
  %v1487 = vadd.f32 %v1286, %v1486
  %v1488 = vpop.f32.mrb[0].mxu0
  %v1489 = vpop.f32.mrb[0].mxu0
  %v1490 = vadd.f32 %v1286, %v1489
  %v1491 = vpop.f32.mrb[0].mxu0
  %1492 = vmatprep.mubr.bf16.mxu0 0
  %1493 = vmatmul.mubr.bf16.gmra.mrb[0].mxu0 %v1334
  %v1494 = vpop.f32.mrb[0].mxu0
  %v1495 = vadd.f32 %v1286, %v1494
  %v1496 = vpop.f32.mrb[0].mxu0
  %v1497 = vpop.f32.mrb[0].mxu0
  %v1498 = vadd.f32 %v1286, %v1497
  %v1499 = vpop.f32.mrb[0].mxu0
  %1500 = vmatprep.mubr.bf16.mxu0 0
  %1501 = vmatmul.mubr.bf16.gmra.mrb[0].mxu0 %v1337
  %v1502 = vpop.f32.mrb[0].mxu0
  %v1503 = vadd.f32 %v1286, %v1502
  %v1504 = vpop.f32.mrb[0].mxu0
  %v1505 = vpop.f32.mrb[0].mxu0
  %v1506 = vadd.f32 %v1286, %v1505
  %v1507 = vpop.f32.mrb[0].mxu0
  %1508 = vmatprep.mubr.bf16.mxu0 0
  %1509 = vmatmul.mubr.bf16.gmra.mrb[0].mxu0 %v1340
  %v1510 = vpop.f32.mrb[0].mxu0
  %v1511 = vadd.f32 %v1286, %v1510
  %v1512 = vpop.f32.mrb[0].mxu0
  %v1513 = vpop.f32.mrb[0].mxu0
  %v1514 = vadd.f32 %v1286, %v1513
  %v1515 = vpop.f32.mrb[0].mxu0
  %1516 = vmatprep.mubr.bf16.mxu0 0
  %1517 = vmatmul.mubr.bf16.gmra.mrb[0].mxu0 %v1343
  %v1518 = vpop.f32.mrb[0].mxu0
  %v1519 = vadd.f32 %v1286, %v1518
  %v1520 = vpop.f32.mrb[0].mxu0
  %v1521 = vpop.f32.mrb[0].mxu0
  %v1522 = vadd.f32 %v1286, %v1521
  %v1523 = vpop.f32.mrb[0].mxu0
  %1524 = vmatprep.mubr.bf16.mxu0 0
  %1525 = vmatmul.mubr.bf16.gmra.mrb[0].mxu0 %v1346
  %v1526 = vpop.f32.mrb[0].mxu0
  %v1527 = vadd.f32 %v1286, %v1526
  %v1528 = vpop.f32.mrb[0].mxu0
  %v1529 = vpop.f32.mrb[0].mxu0
  %v1530 = vadd.f32 %v1286, %v1529
  %v1531 = vpop.f32.mrb[0].mxu0
  %1532 = vmatprep.mubr.bf16.mxu0 0
  %1533 = vmatmul.mubr.bf16.gmra.mrb[0].mxu0 %v1349
  %v1534 = vpop.f32.mrb[0].mxu0
  %v1535 = vadd.f32 %v1286, %v1534
  %v1536 = vpop.f32.mrb[0].mxu0
  %v1537 = vpop.f32.mrb[0].mxu0
  %v1538 = vadd.f32 %v1286, %v1537
  %v1539 = vpop.f32.mrb[0].mxu0
  %1540 = vmatprep.mubr.bf16.mxu0 0
  %1541 = vmatmul.mubr.bf16.gmra.mrb[0].mxu0 %v1352
  %v1542 = vpop.f32.mrb[0].mxu0
  %v1543 = vadd.f32 %v1286, %v1542
  %v1544 = vpop.f32.mrb[0].mxu0
  %v1545 = vpop.f32.mrb[0].mxu0
  %v1546 = vadd.f32 %v1286, %v1545
  %v1547 = vpop.f32.mrb[0].mxu0
  %1548 = vmatprep.mubr.bf16.mxu0 0
  %1549 = vmatmul.mubr.bf16.gmra.mrb[0].mxu0 %v1355
  %v1550 = vpop.f32.mrb[0].mxu0
  %v1551 = vadd.f32 %v1286, %v1550
  %v1552 = vpop.f32.mrb[0].mxu0
  %v1553 = vpop.f32.mrb[0].mxu0
  %v1554 = vadd.f32 %v1286, %v1553
  %v1555 = vpop.f32.mrb[0].mxu0
  %1556 = vmatprep.mubr.bf16.mxu0 0
  %1557 = vmatmul.mubr.bf16.gmra.mrb[0].mxu0 %v1358
  %v1558 = vpop.f32.mrb[0].mxu0
  %v1559 = vadd.f32 %v1286, %v1558
  %v1560 = vpop.f32.mrb[0].mxu0
  %v1561 = vpop.f32.mrb[0].mxu0
  %v1562 = vadd.f32 %v1286, %v1561
  %v1563 = vpop.f32.mrb[0].mxu0
  %1564 = vmatprep.mubr.bf16.mxu0 0
  %1565 = vmatmul.mubr.bf16.gmra.mrb[0].mxu0 %v1361
  %v1566 = vpop.f32.mrb[0].mxu0
  %v1567 = vadd.f32 %v1286, %v1566
  %v1568 = vpop.f32.mrb[0].mxu0
  %v1569 = vpop.f32.mrb[0].mxu0
  %v1570 = vadd.f32 %v1286, %v1569
  %v1571 = vpop.f32.mrb[0].mxu0
  %1572 = vmatprep.mubr.bf16.mxu0 0
  %1573 = vmatmul.mubr.bf16.gmra.mrb[0].mxu0 %v1364
  %v1574 = vpop.f32.mrb[0].mxu0
  %v1575 = vadd.f32 %v1286, %v1574
  %v1576 = vpop.f32.mrb[0].mxu0
  %v1577 = vpop.f32.mrb[0].mxu0
  %v1578 = vadd.f32 %v1286, %v1577
  %v1579 = vpop.f32.mrb[0].mxu0
  %1580 = vmatprep.mubr.bf16.mxu0 0
  %1581 = vmatmul.mubr.bf16.gmra.mrb[0].mxu0 %v1367
  %v1582 = vpop.f32.mrb[0].mxu0
  %v1583 = vadd.f32 %v1286, %v1582
  %v1584 = vpop.f32.mrb[0].mxu0
  %v1585 = vpop.f32.mrb[0].mxu0
  %v1586 = vadd.f32 %v1286, %v1585
  %v1587 = vpop.f32.mrb[0].mxu0
  %1588 = vmatprep.mubr.bf16.mxu0 0
  %1589 = vmatmul.mubr.bf16.gmra.mrb[0].mxu0 %v1370
  %v1590 = vpop.f32.mrb[0].mxu0
  %v1591 = vadd.f32 %v1286, %v1590
  %v1592 = vpop.f32.mrb[0].mxu0
  %v1593 = vpop.f32.mrb[0].mxu0
  %v1594 = vadd.f32 %v1286, %v1593
  %v1595 = vpop.f32.mrb[0].mxu0
  %1596 = vdwg.mxu0
  %v1597 = vsub.f32 0.0, %v1407
  %v1598 = vsub.f32 0.0, %v1410
  %v1599 = vsub.f32 0.0, %v1415
  %v1600 = vsub.f32 0.0, %v1418
  %v1601 = vsub.f32 0.0, %v1423
  %v1602 = vsub.f32 0.0, %v1426
  %v1603 = vsub.f32 0.0, %v1431
  %v1604 = vsub.f32 0.0, %v1434
  %v1605 = vsub.f32 0.0, %v1439
  %v1606 = vsub.f32 0.0, %v1442
  %v1607 = vsub.f32 0.0, %v1447
  %v1608 = vsub.f32 0.0, %v1450
  %v1609 = vsub.f32 0.0, %v1455
  %v1610 = vsub.f32 0.0, %v1458
  %v1611 = vsub.f32 0.0, %v1463
  %v1612 = vsub.f32 0.0, %v1466
  %v1613 = vsub.f32 0.0, %v1471
  %v1614 = vsub.f32 0.0, %v1474
  %v1615 = vsub.f32 0.0, %v1479
  %v1616 = vsub.f32 0.0, %v1482
  %v1617 = vsub.f32 0.0, %v1487
  %v1618 = vsub.f32 0.0, %v1490
  %v1619 = vsub.f32 0.0, %v1495
  %v1620 = vsub.f32 0.0, %v1498
  %v1621 = vsub.f32 0.0, %v1503
  %v1622 = vsub.f32 0.0, %v1506
  %v1623 = vsub.f32 0.0, %v1511
  %v1624 = vsub.f32 0.0, %v1514
  %v1625 = vsub.f32 0.0, %v1519
  %v1626 = vsub.f32 0.0, %v1522
  %v1627 = vsub.f32 0.0, %v1527
  %v1628 = vsub.f32 0.0, %v1530
  %v1629 = vsub.f32 0.0, %v1535
  %v1630 = vsub.f32 0.0, %v1538
  %v1631 = vsub.f32 0.0, %v1543
  %v1632 = vsub.f32 0.0, %v1546
  %v1633 = vsub.f32 0.0, %v1551
  %v1634 = vsub.f32 0.0, %v1554
  %v1635 = vsub.f32 0.0, %v1559
  %v1636 = vsub.f32 0.0, %v1562
  %v1637 = vsub.f32 0.0, %v1567
  %v1638 = vsub.f32 0.0, %v1570
  %v1639 = vsub.f32 0.0, %v1575
  %v1640 = vsub.f32 0.0, %v1578
  %v1641 = vsub.f32 0.0, %v1583
  %v1642 = vsub.f32 0.0, %v1586
  %v1643 = vsub.f32 0.0, %v1591
  %v1644 = vsub.f32 0.0, %v1594
  %v1645 = vmul.f32 %v1597, 1.442695
  %v1646 = vpow.pop %v1645
  %v1647 = vmul.f32 %v1598, 1.442695
  %v1648 = vpow.pop %v1647
  %v1649 = vmul.f32 %v1599, 1.442695
  %v1650 = vpow.pop %v1649
  %v1651 = vmul.f32 %v1600, 1.442695
  %v1652 = vpow.pop %v1651
  %v1653 = vmul.f32 %v1601, 1.442695
  %v1654 = vpow.pop %v1653
  %v1655 = vmul.f32 %v1602, 1.442695
  %v1656 = vpow.pop %v1655
  %v1657 = vmul.f32 %v1603, 1.442695
  %v1658 = vpow.pop %v1657
  %v1659 = vmul.f32 %v1604, 1.442695
  %v1660 = vpow.pop %v1659
  %v1661 = vmul.f32 %v1605, 1.442695
  %v1662 = vpow.pop %v1661
  %v1663 = vmul.f32 %v1606, 1.442695
  %v1664 = vpow.pop %v1663
  %v1665 = vmul.f32 %v1607, 1.442695
  %v1666 = vpow.pop %v1665
  %v1667 = vmul.f32 %v1608, 1.442695
  %v1668 = vpow.pop %v1667
  %v1669 = vmul.f32 %v1609, 1.442695
  %v1670 = vpow.pop %v1669
  %v1671 = vmul.f32 %v1610, 1.442695
  %v1672 = vpow.pop %v1671
  %v1673 = vmul.f32 %v1611, 1.442695
  %v1674 = vpow.pop %v1673
  %v1675 = vmul.f32 %v1612, 1.442695
  %v1676 = vpow.pop %v1675
  %v1677 = vmul.f32 %v1613, 1.442695
  %v1678 = vpow.pop %v1677
  %v1679 = vmul.f32 %v1614, 1.442695
  %v1680 = vpow.pop %v1679
  %v1681 = vmul.f32 %v1615, 1.442695
  %v1682 = vpow.pop %v1681
  %v1683 = vmul.f32 %v1616, 1.442695
  %v1684 = vpow.pop %v1683
  %v1685 = vmul.f32 %v1617, 1.442695
  %v1686 = vpow.pop %v1685
  %v1687 = vmul.f32 %v1618, 1.442695
  %v1688 = vpow.pop %v1687
  %v1689 = vmul.f32 %v1619, 1.442695
  %v1690 = vpow.pop %v1689
  %v1691 = vmul.f32 %v1620, 1.442695
  %v1692 = vpow.pop %v1691
  %v1693 = vmul.f32 %v1621, 1.442695
  %v1694 = vpow.pop %v1693
  %v1695 = vmul.f32 %v1622, 1.442695
  %v1696 = vpow.pop %v1695
  %v1697 = vmul.f32 %v1623, 1.442695
  %v1698 = vpow.pop %v1697
  %v1699 = vmul.f32 %v1624, 1.442695
  %v1700 = vpow.pop %v1699
  %v1701 = vmul.f32 %v1625, 1.442695
  %v1702 = vpow.pop %v1701
  %v1703 = vmul.f32 %v1626, 1.442695
  %v1704 = vpow.pop %v1703
  %v1705 = vmul.f32 %v1627, 1.442695
  %v1706 = vpow.pop %v1705
  %v1707 = vmul.f32 %v1628, 1.442695
  %v1708 = vpow.pop %v1707
  %v1709 = vmul.f32 %v1629, 1.442695
  %v1710 = vpow.pop %v1709
  %v1711 = vmul.f32 %v1630, 1.442695
  %v1712 = vpow.pop %v1711
  %v1713 = vmul.f32 %v1631, 1.442695
  %v1714 = vpow.pop %v1713
  %v1715 = vmul.f32 %v1632, 1.442695
  %v1716 = vpow.pop %v1715
  %v1717 = vmul.f32 %v1633, 1.442695
  %v1718 = vpow.pop %v1717
  %v1719 = vmul.f32 %v1634, 1.442695
  %v1720 = vpow.pop %v1719
  %v1721 = vmul.f32 %v1635, 1.442695
  %v1722 = vpow.pop %v1721
  %v1723 = vmul.f32 %v1636, 1.442695
  %v1724 = vpow.pop %v1723
  %v1725 = vmul.f32 %v1637, 1.442695
  %v1726 = vpow.pop %v1725
  %v1727 = vmul.f32 %v1638, 1.442695
  %v1728 = vpow.pop %v1727
  %v1729 = vmul.f32 %v1639, 1.442695
  %v1730 = vpow.pop %v1729
  %v1731 = vmul.f32 %v1640, 1.442695
  %v1732 = vpow.pop %v1731
  %v1733 = vmul.f32 %v1641, 1.442695
  %v1734 = vpow.pop %v1733
  %v1735 = vmul.f32 %v1642, 1.442695
  %v1736 = vpow.pop %v1735
  %v1737 = vmul.f32 %v1643, 1.442695
  %v1738 = vpow.pop %v1737
  %v1739 = vmul.f32 %v1644, 1.442695
  %v1740 = vpow.pop %v1739
  %v1741 = vadd.f32 %v1646, 1.0
  %v1742 = vadd.f32 %v1648, 1.0
  %v1743 = vadd.f32 %v1650, 1.0
  %v1744 = vadd.f32 %v1652, 1.0
  %v1745 = vadd.f32 %v1654, 1.0
  %v1746 = vadd.f32 %v1656, 1.0
  %v1747 = vadd.f32 %v1658, 1.0
  %v1748 = vadd.f32 %v1660, 1.0
  %v1749 = vadd.f32 %v1662, 1.0
  %v1750 = vadd.f32 %v1664, 1.0
  %v1751 = vadd.f32 %v1666, 1.0
  %v1752 = vadd.f32 %v1668, 1.0
  %v1753 = vadd.f32 %v1670, 1.0
  %v1754 = vadd.f32 %v1672, 1.0
  %v1755 = vadd.f32 %v1674, 1.0
  %v1756 = vadd.f32 %v1676, 1.0
  %v1757 = vadd.f32 %v1678, 1.0
  %v1758 = vadd.f32 %v1680, 1.0
  %v1759 = vadd.f32 %v1682, 1.0
  %v1760 = vadd.f32 %v1684, 1.0
  %v1761 = vadd.f32 %v1686, 1.0
  %v1762 = vadd.f32 %v1688, 1.0
  %v1763 = vadd.f32 %v1690, 1.0
  %v1764 = vadd.f32 %v1692, 1.0
  %v1765 = vadd.f32 %v1694, 1.0
  %v1766 = vadd.f32 %v1696, 1.0
  %v1767 = vadd.f32 %v1698, 1.0
  %v1768 = vadd.f32 %v1700, 1.0
  %v1769 = vadd.f32 %v1702, 1.0
  %v1770 = vadd.f32 %v1704, 1.0
  %v1771 = vadd.f32 %v1706, 1.0
  %v1772 = vadd.f32 %v1708, 1.0
  %v1773 = vadd.f32 %v1710, 1.0
  %v1774 = vadd.f32 %v1712, 1.0
  %v1775 = vadd.f32 %v1714, 1.0
  %v1776 = vadd.f32 %v1716, 1.0
  %v1777 = vadd.f32 %v1718, 1.0
  %v1778 = vadd.f32 %v1720, 1.0
  %v1779 = vadd.f32 %v1722, 1.0
  %v1780 = vadd.f32 %v1724, 1.0
  %v1781 = vadd.f32 %v1726, 1.0
  %v1782 = vadd.f32 %v1728, 1.0
  %v1783 = vadd.f32 %v1730, 1.0
  %v1784 = vadd.f32 %v1732, 1.0
  %v1785 = vadd.f32 %v1734, 1.0
  %v1786 = vadd.f32 %v1736, 1.0
  %v1787 = vadd.f32 %v1738, 1.0
  %v1788 = vadd.f32 %v1740, 1.0
  %v1789 = vrcp.pop %v1741
  %v1790 = vrcp.pop %v1742
  %v1791 = vrcp.pop %v1743
  %v1792 = vrcp.pop %v1744
  %v1793 = vrcp.pop %v1745
  %v1794 = vrcp.pop %v1746
  %v1795 = vrcp.pop %v1747
  %v1796 = vrcp.pop %v1748
  %v1797 = vrcp.pop %v1749
  %v1798 = vrcp.pop %v1750
  %v1799 = vrcp.pop %v1751
  %v1800 = vrcp.pop %v1752
  %v1801 = vrcp.pop %v1753
  %v1802 = vrcp.pop %v1754
  %v1803 = vrcp.pop %v1755
  %v1804 = vrcp.pop %v1756
  %v1805 = vrcp.pop %v1757
  %v1806 = vrcp.pop %v1758
  %v1807 = vrcp.pop %v1759
  %v1808 = vrcp.pop %v1760
  %v1809 = vrcp.pop %v1761
  %v1810 = vrcp.pop %v1762
  %v1811 = vrcp.pop %v1763
  %v1812 = vrcp.pop %v1764
  %v1813 = vrcp.pop %v1765
  %v1814 = vrcp.pop %v1766
  %v1815 = vrcp.pop %v1767
  %v1816 = vrcp.pop %v1768
  %v1817 = vrcp.pop %v1769
  %v1818 = vrcp.pop %v1770
  %v1819 = vrcp.pop %v1771
  %v1820 = vrcp.pop %v1772
  %v1821 = vrcp.pop %v1773
  %v1822 = vrcp.pop %v1774
  %v1823 = vrcp.pop %v1775
  %v1824 = vrcp.pop %v1776
  %v1825 = vrcp.pop %v1777
  %v1826 = vrcp.pop %v1778
  %v1827 = vrcp.pop %v1779
  %v1828 = vrcp.pop %v1780
  %v1829 = vrcp.pop %v1781
  %v1830 = vrcp.pop %v1782
  %v1831 = vrcp.pop %v1783
  %v1832 = vrcp.pop %v1784
  %v1833 = vrcp.pop %v1785
  %v1834 = vrcp.pop %v1786
  %v1835 = vrcp.pop %v1787
  %v1836 = vrcp.pop %v1788
  %vm1837 = vcmask 7168
  %1838 = vst.msk [vmem:[%s9] sm:$0xff] %vm1837, %v1789
  %1839 = vst.msk [vmem:[%s9 + $0x8] sm:$0xff] %vm1837, %v1790
  %1840 = vst.msk [vmem:[%s9 + $0x10] sm:$0xff] %vm1837, %v1791
  %1841 = vst.msk [vmem:[%s9 + $0x18] sm:$0xff] %vm1837, %v1792
  %1842 = vst.msk [vmem:[%s9 + $0x20] sm:$0xff] %vm1837, %v1793
  %1843 = vst.msk [vmem:[%s9 + $0x28] sm:$0xff] %vm1837, %v1794
  %1844 = vst.msk [vmem:[%s9 + $0x30] sm:$0xff] %vm1837, %v1795
  %1845 = vst.msk [vmem:[%s9 + $0x38] sm:$0xff] %vm1837, %v1796
  %1846 = vst.msk [vmem:[%s9 + $0x40] sm:$0xff] %vm1837, %v1797
  %1847 = vst.msk [vmem:[%s9 + $0x48] sm:$0xff] %vm1837, %v1798
  %1848 = vst.msk [vmem:[%s9 + $0x50] sm:$0xff] %vm1837, %v1799
  %1849 = vst.msk [vmem:[%s9 + $0x58] sm:$0xff] %vm1837, %v1800
  %1850 = vst.msk [vmem:[%s9 + $0x60] sm:$0xff] %vm1837, %v1801
  %1851 = vst.msk [vmem:[%s9 + $0x68] sm:$0xff] %vm1837, %v1802
  %1852 = vst.msk [vmem:[%s9 + $0x70] sm:$0xff] %vm1837, %v1803
  %1853 = vst.msk [vmem:[%s9 + $0x78] sm:$0xff] %vm1837, %v1804
  %1854 = vst.msk [vmem:[%s9 + $0x80] sm:$0xff] %vm1837, %v1805
  %1855 = vst.msk [vmem:[%s9 + $0x88] sm:$0xff] %vm1837, %v1806
  %1856 = vst.msk [vmem:[%s9 + $0x90] sm:$0xff] %vm1837, %v1807
  %1857 = vst.msk [vmem:[%s9 + $0x98] sm:$0xff] %vm1837, %v1808
  %1858 = vst.msk [vmem:[%s9 + $0xa0] sm:$0xff] %vm1837, %v1809
  %1859 = vst.msk [vmem:[%s9 + $0xa8] sm:$0xff] %vm1837, %v1810
  %1860 = vst.msk [vmem:[%s9 + $0xb0] sm:$0xff] %vm1837, %v1811
  %1861 = vst.msk [vmem:[%s9 + $0xb8] sm:$0xff] %vm1837, %v1812
  %1862 = vst.msk [vmem:[%s9 + $0xc0] sm:$0xff] %vm1837, %v1813
  %1863 = vst.msk [vmem:[%s9 + $0xc8] sm:$0xff] %vm1837, %v1814
  %1864 = vst.msk [vmem:[%s9 + $0xd0] sm:$0xff] %vm1837, %v1815
  %1865 = vst.msk [vmem:[%s9 + $0xd8] sm:$0xff] %vm1837, %v1816
  %1866 = vst.msk [vmem:[%s9 + $0xe0] sm:$0xff] %vm1837, %v1817
  %1867 = vst.msk [vmem:[%s9 + $0xe8] sm:$0xff] %vm1837, %v1818
  %1868 = vst.msk [vmem:[%s9 + $0xf0] sm:$0xff] %vm1837, %v1819
  %1869 = vst.msk [vmem:[%s9 + $0xf8] sm:$0xff] %vm1837, %v1820
  %1870 = vst.msk [vmem:[%s9 + $0x100] sm:$0xff] %vm1837, %v1821
  %1871 = vst.msk [vmem:[%s9 + $0x108] sm:$0xff] %vm1837, %v1822
  %1872 = vst.msk [vmem:[%s9 + $0x110] sm:$0xff] %vm1837, %v1823
  %1873 = vst.msk [vmem:[%s9 + $0x118] sm:$0xff] %vm1837, %v1824
  %1874 = vst.msk [vmem:[%s9 + $0x120] sm:$0xff] %vm1837, %v1825
  %1875 = vst.msk [vmem:[%s9 + $0x128] sm:$0xff] %vm1837, %v1826
  %1876 = vst.msk [vmem:[%s9 + $0x130] sm:$0xff] %vm1837, %v1827
  %1877 = vst.msk [vmem:[%s9 + $0x138] sm:$0xff] %vm1837, %v1828
  %1878 = vst.msk [vmem:[%s9 + $0x140] sm:$0xff] %vm1837, %v1829
  %1879 = vst.msk [vmem:[%s9 + $0x148] sm:$0xff] %vm1837, %v1830
  %1880 = vst.msk [vmem:[%s9 + $0x150] sm:$0xff] %vm1837, %v1831
  %1881 = vst.msk [vmem:[%s9 + $0x158] sm:$0xff] %vm1837, %v1832
  %1882 = vst.msk [vmem:[%s9 + $0x160] sm:$0xff] %vm1837, %v1833
  %1883 = vst.msk [vmem:[%s9 + $0x168] sm:$0xff] %vm1837, %v1834
  %1884 = vst.msk [vmem:[%s9 + $0x170] sm:$0xff] %vm1837, %v1835
  %1885 = vst.msk [vmem:[%s9 + $0x178] sm:$0xff] %vm1837, %v1836
  // Predicated region
  $region38: #{ddos_mlp_forward.1} parent=0 // pred_check
    _
  $region39: #{ddos_mlp_forward.1} parent=0 // pred_check_branch
    %1887 = sbr.rel (0) target = $region41
  $region40: #{ddos_mlp_forward.1} parent=0 // pred_region
    _
  $region41: #{ddos_mlp_forward.1} parent=0 // pred_fallthru
    _
  // Predicated region
  $region42: #{ddos_mlp_forward.1} parent=0 // pred_check
    _
  $region43: #{ddos_mlp_forward.1} parent=0 // pred_check_branch
    %1889 = sbr.rel (0) target = $region45
  $region44: #{ddos_mlp_forward.1} parent=0 // pred_region
    _
  $region45: #{ddos_mlp_forward.1} parent=0 // pred_fallthru
    _

</llo_original>
